<compile_context>
chip_gen: v5e
topology: v5e:2x2
jax: 0.10.0
libtpu: 0.0.40
codegen_flags: <defaults>
</compile_context>

<pallas_src>
import math
import functools

import jax
import jax.numpy as jnp
from jax.experimental import pallas as pl
from jax.experimental.pallas import tpu as pltpu


def _round_up(x, m):
    return ((x + m - 1) // m) * m


# --------------------------------- kernel -----------------------------------

def _scalar_fma_layer(w_ref, b_ref, planes, *, relu, out_dtype):
    """out[j] = act(sum_k w[j,k] * planes[k] + b[j]) as SMEM-scalar VPU FMAs.

    w_ref: (out, in) SMEM ref, b_ref: (out,) SMEM ref,
    planes: list of `in` dense (groups, 128) arrays (one per input feature).
    Returns a list of `out` dense (groups, 128) arrays.
    """
    out_dim, in_dim = w_ref.shape
    cdt = planes[0].dtype
    outs = []
    for j in range(out_dim):                      # unrolled at trace time
        acc = planes[0] * w_ref[j, 0].astype(cdt)
        for k in range(1, in_dim):
            acc = acc + planes[k] * w_ref[j, k].astype(cdt)
        acc = acc + b_ref[j].astype(cdt)
        if relu:
            acc = jnp.maximum(acc, 0.0)
        outs.append(acc.astype(out_dtype))
    return outs


def dqn_kernel(x_ref, w1_ref, b1_ref, w2_ref, b2_ref, w3_ref, b3_ref, q_ref,
               *, hidden_dtype):
    """Fused 3-layer MLP on one batch tile of dense 128-lane sample planes.

    x_ref: (input_dim, g, 128) VMEM, w*/b*: SMEM, q_ref: (A, g, 128) VMEM.
    """
    input_dim = x_ref.shape[0]
    num_actions = q_ref.shape[0]
    # Cast to compute dtype in-kernel (x is streamed in its original dtype).
    x = [x_ref[k].astype(hidden_dtype) for k in range(input_dim)]
    h1 = _scalar_fma_layer(w1_ref, b1_ref, x, relu=True, out_dtype=hidden_dtype)
    h2 = _scalar_fma_layer(w2_ref, b2_ref, h1, relu=True, out_dtype=jnp.float32)
    q = _scalar_fma_layer(w3_ref, b3_ref, h2, relu=False, out_dtype=jnp.float32)
    for a in range(num_actions):
        q_ref[a] = q[a].astype(q_ref.dtype)


# -------------------------------- wrapper -----------------------------------

def _pick_tiling(batch, block_batch):
    """Pad batch to 128-sample groups and pick groups-per-block `g` such that
    g divides the group count and the blocked second-minor dim is either the
    full extent or a multiple of 8 (f32 sublane tiling constraint)."""
    n_groups = _round_up(batch, 128) // 128
    if n_groups > 8:
        n_groups = _round_up(n_groups, 8)          # allow multiple-of-8 blocking
    target_g = max(1, block_batch // 128)
    if n_groups <= 8:
        g = n_groups                               # single (full-extent) block
    else:
        # largest multiple-of-8 divisor of n_groups, capped so the grid keeps
        # >= 2 blocks (v7x megacore) and the tile stays <= block_batch lanes.
        cap = min(target_g, max(8, ((n_groups // 2) // 8) * 8))
        g = 8
        for d in range(8, cap + 1, 8):
            if n_groups % d == 0:
                g = d
    return n_groups, g


@functools.partial(jax.jit, static_argnames=("block_batch", "hidden_dtype"))
def dqn_forward(x, params, *, block_batch=32768, hidden_dtype=jnp.float32):
    """Q = DQN(x).  x: (batch, input_dim) -> (batch, num_actions) float32."""
    w1, b1, w2, b2, w3, b3 = params
    batch, input_dim = x.shape
    num_actions = w3.shape[0]

    n_groups, g = _pick_tiling(batch, block_batch)
    batch_pad = n_groups * 128
    grid = (n_groups // g,)

    # Single fused pad+relayout copy in the input's ORIGINAL dtype:
    # (batch, in) -> (in, n_groups, 128) dense lane planes (128 samples/row).
    x_pad = jnp.pad(x, ((0, batch_pad - batch), (0, 0)))
    x_planes = x_pad.reshape(n_groups, 128, input_dim).transpose(2, 0, 1)

    smem = pl.BlockSpec(memory_space=pltpu.MemorySpace.SMEM)

    q_planes = pl.pallas_call(
        functools.partial(dqn_kernel, hidden_dtype=hidden_dtype),
        out_shape=jax.ShapeDtypeStruct((num_actions, n_groups, 128), jnp.float32),
        grid=grid,
        in_specs=[
            pl.BlockSpec((input_dim, g, 128), lambda i: (0, i, 0)),  # streamed x
            smem, smem, smem, smem, smem, smem,        # resident weights/biases
        ],
        out_specs=pl.BlockSpec((num_actions, g, 128), lambda i: (0, i, 0)),
        compiler_params=pltpu.CompilerParams(
            dimension_semantics=("parallel",)),
    )(x_planes, w1, b1, w2, b2, w3, b3)

    # (A, n_groups, 128) -> (batch, A): one fused reshape+slice+transpose copy.
    return q_planes.reshape(num_actions, batch_pad)[:, :batch].T


# ---------------- parameter init (matches PyTorch DQN_Network) ----------------

def kaiming_uniform(key, out_features, in_features):
    """nn.init.kaiming_uniform_(W, nonlinearity='relu'): bound = sqrt(2)*sqrt(3/fan_in)."""
    bound = math.sqrt(2.0) * math.sqrt(3.0 / in_features)
    return jax.random.uniform(
        key, (out_features, in_features), jnp.float32, -bound, bound)


def linear_bias(key, out_features, in_features):
    """PyTorch default nn.Linear bias init: U(-1/sqrt(fan_in), 1/sqrt(fan_in))."""
    bound = 1.0 / math.sqrt(in_features)
    return jax.random.uniform(key, (out_features,), jnp.float32, -bound, bound)


def init_dqn_params(key, input_dim, num_actions):
    k = jax.random.split(key, 6)
    return (
        kaiming_uniform(k[0], 12, input_dim), linear_bias(k[1], 12, input_dim),
        kaiming_uniform(k[2], 8, 12),         linear_bias(k[3], 8, 12),
        kaiming_uniform(k[4], num_actions, 8), linear_bias(k[5], num_actions, 8),
    )


def dqn_reference(x, params):
    """Pure-JAX reference (PyTorch semantics: x @ W.T + b)."""
    w1, b1, w2, b2, w3, b3 = params
    h1 = jnp.maximum(x @ w1.T + b1, 0.0)
    h2 = jnp.maximum(h1 @ w2.T + b2, 0.0)
    return h2 @ w3.T + b3


if __name__ == "__main__":
    key = jax.random.PRNGKey(0)
    k_x, k_p = jax.random.split(key)

    input_dim = 4
    num_actions = 2
    params = init_dqn_params(k_p, input_dim, num_actions)

    # batch=300 : single-block path with 128-sample tail padding.
    # batch=2600: multi-block path (grid of 3 lane-dense tiles) + group padding.
    for i, batch in enumerate((300, 2600)):
        x = jax.random.normal(jax.random.fold_in(k_x, i), (batch, input_dim),
                              dtype=jnp.float32)
        q = jax.block_until_ready(dqn_forward(x, params))
        q_ref = dqn_reference(x, params)
        assert q.shape == (batch, num_actions)
        assert jnp.allclose(q, q_ref, atol=1e-5, rtol=1e-5), "mismatch vs reference"

    print("KERNEL_OK")
</pallas_src>

<mosaic_0001>
module attributes {stable_mosaic.version = 11 : i64} {
  func.func @dqn_kernel(%arg0: i32, %arg1: memref<4x3x128xf32, #tpu.memory_space<vmem>>, %arg2: memref<12x4xf32, #tpu.memory_space<smem>>, %arg3: memref<12xf32, #tpu.memory_space<smem>>, %arg4: memref<8x12xf32, #tpu.memory_space<smem>>, %arg5: memref<8xf32, #tpu.memory_space<smem>>, %arg6: memref<2x8xf32, #tpu.memory_space<smem>>, %arg7: memref<2xf32, #tpu.memory_space<smem>>, %arg8: memref<2x3x128xf32, #tpu.memory_space<vmem>>) attributes {dimension_semantics = [#tpu.dimension_semantics<parallel>], iteration_bounds = array<i64: 1>, scalar_prefetch = 0 : i64, scratch_operands = 0 : i64, tpu.core_type = #tpu.core_type<tc>, window_params = [{transform_indices = @transform_0, window_bounds = array<i64: 4, 3, 128>}, {transform_indices = @transform_1, window_bounds = array<i64: 12, 4>}, {transform_indices = @transform_2, window_bounds = array<i64: 12>}, {transform_indices = @transform_3, window_bounds = array<i64: 8, 12>}, {transform_indices = @transform_4, window_bounds = array<i64: 8>}, {transform_indices = @transform_5, window_bounds = array<i64: 2, 8>}, {transform_indices = @transform_6, window_bounds = array<i64: 2>}, {transform_indices = @transform_7, window_bounds = array<i64: 2, 3, 128>}]} {
    %c0 = arith.constant 0 : index
    %c0_0 = arith.constant 0 : index
    %c0_1 = arith.constant 0 : index
    %0 = vector.load %arg1[%c0, %c0_0, %c0_1] : memref<4x3x128xf32, #tpu.memory_space<vmem>>, vector<1x3x128xf32>
    %1 = vector.shape_cast %0 : vector<1x3x128xf32> to vector<3x128xf32>
    %c1 = arith.constant 1 : index
    %c0_2 = arith.constant 0 : index
    %c0_3 = arith.constant 0 : index
    %2 = vector.load %arg1[%c1, %c0_2, %c0_3] : memref<4x3x128xf32, #tpu.memory_space<vmem>>, vector<1x3x128xf32>
    %3 = vector.shape_cast %2 : vector<1x3x128xf32> to vector<3x128xf32>
    %c2 = arith.constant 2 : index
    %c0_4 = arith.constant 0 : index
    %c0_5 = arith.constant 0 : index
    %4 = vector.load %arg1[%c2, %c0_4, %c0_5] : memref<4x3x128xf32, #tpu.memory_space<vmem>>, vector<1x3x128xf32>
    %5 = vector.shape_cast %4 : vector<1x3x128xf32> to vector<3x128xf32>
    %c3 = arith.constant 3 : index
    %c0_6 = arith.constant 0 : index
    %c0_7 = arith.constant 0 : index
    %6 = vector.load %arg1[%c3, %c0_6, %c0_7] : memref<4x3x128xf32, #tpu.memory_space<vmem>>, vector<1x3x128xf32>
    %7 = vector.shape_cast %6 : vector<1x3x128xf32> to vector<3x128xf32>
    %c0_8 = arith.constant 0 : index
    %c0_9 = arith.constant 0 : index
    %8 = memref.load %arg2[%c0_8, %c0_9] : memref<12x4xf32, #tpu.memory_space<smem>>
    %9 = vector.broadcast %8 : f32 to vector<3x128xf32>
    %10 = arith.mulf %1, %9 : vector<3x128xf32>
    %c0_10 = arith.constant 0 : index
    %c1_11 = arith.constant 1 : index
    %11 = memref.load %arg2[%c0_10, %c1_11] : memref<12x4xf32, #tpu.memory_space<smem>>
    %12 = vector.broadcast %11 : f32 to vector<3x128xf32>
    %13 = arith.mulf %3, %12 : vector<3x128xf32>
    %14 = arith.addf %10, %13 : vector<3x128xf32>
    %c0_12 = arith.constant 0 : index
    %c2_13 = arith.constant 2 : index
    %15 = memref.load %arg2[%c0_12, %c2_13] : memref<12x4xf32, #tpu.memory_space<smem>>
    %16 = vector.broadcast %15 : f32 to vector<3x128xf32>
    %17 = arith.mulf %5, %16 : vector<3x128xf32>
    %18 = arith.addf %14, %17 : vector<3x128xf32>
    %c0_14 = arith.constant 0 : index
    %c3_15 = arith.constant 3 : index
    %19 = memref.load %arg2[%c0_14, %c3_15] : memref<12x4xf32, #tpu.memory_space<smem>>
    %20 = vector.broadcast %19 : f32 to vector<3x128xf32>
    %21 = arith.mulf %7, %20 : vector<3x128xf32>
    %22 = arith.addf %18, %21 : vector<3x128xf32>
    %c0_16 = arith.constant 0 : index
    %23 = memref.load %arg3[%c0_16] : memref<12xf32, #tpu.memory_space<smem>>
    %24 = vector.broadcast %23 : f32 to vector<3x128xf32>
    %25 = arith.addf %22, %24 : vector<3x128xf32>
    %cst = arith.constant 0.000000e+00 : f32
    %26 = vector.broadcast %cst : f32 to vector<3x128xf32>
    %27 = arith.maximumf %25, %26 : vector<3x128xf32>
    %c1_17 = arith.constant 1 : index
    %c0_18 = arith.constant 0 : index
    %28 = memref.load %arg2[%c1_17, %c0_18] : memref<12x4xf32, #tpu.memory_space<smem>>
    %29 = vector.broadcast %28 : f32 to vector<3x128xf32>
    %30 = arith.mulf %1, %29 : vector<3x128xf32>
    %c1_19 = arith.constant 1 : index
    %c1_20 = arith.constant 1 : index
    %31 = memref.load %arg2[%c1_19, %c1_20] : memref<12x4xf32, #tpu.memory_space<smem>>
    %32 = vector.broadcast %31 : f32 to vector<3x128xf32>
    %33 = arith.mulf %3, %32 : vector<3x128xf32>
    %34 = arith.addf %30, %33 : vector<3x128xf32>
    %c1_21 = arith.constant 1 : index
    %c2_22 = arith.constant 2 : index
    %35 = memref.load %arg2[%c1_21, %c2_22] : memref<12x4xf32, #tpu.memory_space<smem>>
    %36 = vector.broadcast %35 : f32 to vector<3x128xf32>
    %37 = arith.mulf %5, %36 : vector<3x128xf32>
    %38 = arith.addf %34, %37 : vector<3x128xf32>
    %c1_23 = arith.constant 1 : index
    %c3_24 = arith.constant 3 : index
    %39 = memref.load %arg2[%c1_23, %c3_24] : memref<12x4xf32, #tpu.memory_space<smem>>
    %40 = vector.broadcast %39 : f32 to vector<3x128xf32>
    %41 = arith.mulf %7, %40 : vector<3x128xf32>
    %42 = arith.addf %38, %41 : vector<3x128xf32>
    %c1_25 = arith.constant 1 : index
    %43 = memref.load %arg3[%c1_25] : memref<12xf32, #tpu.memory_space<smem>>
    %44 = vector.broadcast %43 : f32 to vector<3x128xf32>
    %45 = arith.addf %42, %44 : vector<3x128xf32>
    %cst_26 = arith.constant 0.000000e+00 : f32
    %46 = vector.broadcast %cst_26 : f32 to vector<3x128xf32>
    %47 = arith.maximumf %45, %46 : vector<3x128xf32>
    %c2_27 = arith.constant 2 : index
    %c0_28 = arith.constant 0 : index
    %48 = memref.load %arg2[%c2_27, %c0_28] : memref<12x4xf32, #tpu.memory_space<smem>>
    %49 = vector.broadcast %48 : f32 to vector<3x128xf32>
    %50 = arith.mulf %1, %49 : vector<3x128xf32>
    %c2_29 = arith.constant 2 : index
    %c1_30 = arith.constant 1 : index
    %51 = memref.load %arg2[%c2_29, %c1_30] : memref<12x4xf32, #tpu.memory_space<smem>>
    %52 = vector.broadcast %51 : f32 to vector<3x128xf32>
    %53 = arith.mulf %3, %52 : vector<3x128xf32>
    %54 = arith.addf %50, %53 : vector<3x128xf32>
    %c2_31 = arith.constant 2 : index
    %c2_32 = arith.constant 2 : index
    %55 = memref.load %arg2[%c2_31, %c2_32] : memref<12x4xf32, #tpu.memory_space<smem>>
    %56 = vector.broadcast %55 : f32 to vector<3x128xf32>
    %57 = arith.mulf %5, %56 : vector<3x128xf32>
    %58 = arith.addf %54, %57 : vector<3x128xf32>
    %c2_33 = arith.constant 2 : index
    %c3_34 = arith.constant 3 : index
    %59 = memref.load %arg2[%c2_33, %c3_34] : memref<12x4xf32, #tpu.memory_space<smem>>
    %60 = vector.broadcast %59 : f32 to vector<3x128xf32>
    %61 = arith.mulf %7, %60 : vector<3x128xf32>
    %62 = arith.addf %58, %61 : vector<3x128xf32>
    %c2_35 = arith.constant 2 : index
    %63 = memref.load %arg3[%c2_35] : memref<12xf32, #tpu.memory_space<smem>>
    %64 = vector.broadcast %63 : f32 to vector<3x128xf32>
    %65 = arith.addf %62, %64 : vector<3x128xf32>
    %cst_36 = arith.constant 0.000000e+00 : f32
    %66 = vector.broadcast %cst_36 : f32 to vector<3x128xf32>
    %67 = arith.maximumf %65, %66 : vector<3x128xf32>
    %c3_37 = arith.constant 3 : index
    %c0_38 = arith.constant 0 : index
    %68 = memref.load %arg2[%c3_37, %c0_38] : memref<12x4xf32, #tpu.memory_space<smem>>
    %69 = vector.broadcast %68 : f32 to vector<3x128xf32>
    %70 = arith.mulf %1, %69 : vector<3x128xf32>
    %c3_39 = arith.constant 3 : index
    %c1_40 = arith.constant 1 : index
    %71 = memref.load %arg2[%c3_39, %c1_40] : memref<12x4xf32, #tpu.memory_space<smem>>
    %72 = vector.broadcast %71 : f32 to vector<3x128xf32>
    %73 = arith.mulf %3, %72 : vector<3x128xf32>
    %74 = arith.addf %70, %73 : vector<3x128xf32>
    %c3_41 = arith.constant 3 : index
    %c2_42 = arith.constant 2 : index
    %75 = memref.load %arg2[%c3_41, %c2_42] : memref<12x4xf32, #tpu.memory_space<smem>>
    %76 = vector.broadcast %75 : f32 to vector<3x128xf32>
    %77 = arith.mulf %5, %76 : vector<3x128xf32>
    %78 = arith.addf %74, %77 : vector<3x128xf32>
    %c3_43 = arith.constant 3 : index
    %c3_44 = arith.constant 3 : index
    %79 = memref.load %arg2[%c3_43, %c3_44] : memref<12x4xf32, #tpu.memory_space<smem>>
    %80 = vector.broadcast %79 : f32 to vector<3x128xf32>
    %81 = arith.mulf %7, %80 : vector<3x128xf32>
    %82 = arith.addf %78, %81 : vector<3x128xf32>
    %c3_45 = arith.constant 3 : index
    %83 = memref.load %arg3[%c3_45] : memref<12xf32, #tpu.memory_space<smem>>
    %84 = vector.broadcast %83 : f32 to vector<3x128xf32>
    %85 = arith.addf %82, %84 : vector<3x128xf32>
    %cst_46 = arith.constant 0.000000e+00 : f32
    %86 = vector.broadcast %cst_46 : f32 to vector<3x128xf32>
    %87 = arith.maximumf %85, %86 : vector<3x128xf32>
    %c4 = arith.constant 4 : index
    %c0_47 = arith.constant 0 : index
    %88 = memref.load %arg2[%c4, %c0_47] : memref<12x4xf32, #tpu.memory_space<smem>>
    %89 = vector.broadcast %88 : f32 to vector<3x128xf32>
    %90 = arith.mulf %1, %89 : vector<3x128xf32>
    %c4_48 = arith.constant 4 : index
    %c1_49 = arith.constant 1 : index
    %91 = memref.load %arg2[%c4_48, %c1_49] : memref<12x4xf32, #tpu.memory_space<smem>>
    %92 = vector.broadcast %91 : f32 to vector<3x128xf32>
    %93 = arith.mulf %3, %92 : vector<3x128xf32>
    %94 = arith.addf %90, %93 : vector<3x128xf32>
    %c4_50 = arith.constant 4 : index
    %c2_51 = arith.constant 2 : index
    %95 = memref.load %arg2[%c4_50, %c2_51] : memref<12x4xf32, #tpu.memory_space<smem>>
    %96 = vector.broadcast %95 : f32 to vector<3x128xf32>
    %97 = arith.mulf %5, %96 : vector<3x128xf32>
    %98 = arith.addf %94, %97 : vector<3x128xf32>
    %c4_52 = arith.constant 4 : index
    %c3_53 = arith.constant 3 : index
    %99 = memref.load %arg2[%c4_52, %c3_53] : memref<12x4xf32, #tpu.memory_space<smem>>
    %100 = vector.broadcast %99 : f32 to vector<3x128xf32>
    %101 = arith.mulf %7, %100 : vector<3x128xf32>
    %102 = arith.addf %98, %101 : vector<3x128xf32>
    %c4_54 = arith.constant 4 : index
    %103 = memref.load %arg3[%c4_54] : memref<12xf32, #tpu.memory_space<smem>>
    %104 = vector.broadcast %103 : f32 to vector<3x128xf32>
    %105 = arith.addf %102, %104 : vector<3x128xf32>
    %cst_55 = arith.constant 0.000000e+00 : f32
    %106 = vector.broadcast %cst_55 : f32 to vector<3x128xf32>
    %107 = arith.maximumf %105, %106 : vector<3x128xf32>
    %c5 = arith.constant 5 : index
    %c0_56 = arith.constant 0 : index
    %108 = memref.load %arg2[%c5, %c0_56] : memref<12x4xf32, #tpu.memory_space<smem>>
    %109 = vector.broadcast %108 : f32 to vector<3x128xf32>
    %110 = arith.mulf %1, %109 : vector<3x128xf32>
    %c5_57 = arith.constant 5 : index
    %c1_58 = arith.constant 1 : index
    %111 = memref.load %arg2[%c5_57, %c1_58] : memref<12x4xf32, #tpu.memory_space<smem>>
    %112 = vector.broadcast %111 : f32 to vector<3x128xf32>
    %113 = arith.mulf %3, %112 : vector<3x128xf32>
    %114 = arith.addf %110, %113 : vector<3x128xf32>
    %c5_59 = arith.constant 5 : index
    %c2_60 = arith.constant 2 : index
    %115 = memref.load %arg2[%c5_59, %c2_60] : memref<12x4xf32, #tpu.memory_space<smem>>
    %116 = vector.broadcast %115 : f32 to vector<3x128xf32>
    %117 = arith.mulf %5, %116 : vector<3x128xf32>
    %118 = arith.addf %114, %117 : vector<3x128xf32>
    %c5_61 = arith.constant 5 : index
    %c3_62 = arith.constant 3 : index
    %119 = memref.load %arg2[%c5_61, %c3_62] : memref<12x4xf32, #tpu.memory_space<smem>>
    %120 = vector.broadcast %119 : f32 to vector<3x128xf32>
    %121 = arith.mulf %7, %120 : vector<3x128xf32>
    %122 = arith.addf %118, %121 : vector<3x128xf32>
    %c5_63 = arith.constant 5 : index
    %123 = memref.load %arg3[%c5_63] : memref<12xf32, #tpu.memory_space<smem>>
    %124 = vector.broadcast %123 : f32 to vector<3x128xf32>
    %125 = arith.addf %122, %124 : vector<3x128xf32>
    %cst_64 = arith.constant 0.000000e+00 : f32
    %126 = vector.broadcast %cst_64 : f32 to vector<3x128xf32>
    %127 = arith.maximumf %125, %126 : vector<3x128xf32>
    %c6 = arith.constant 6 : index
    %c0_65 = arith.constant 0 : index
    %128 = memref.load %arg2[%c6, %c0_65] : memref<12x4xf32, #tpu.memory_space<smem>>
    %129 = vector.broadcast %128 : f32 to vector<3x128xf32>
    %130 = arith.mulf %1, %129 : vector<3x128xf32>
    %c6_66 = arith.constant 6 : index
    %c1_67 = arith.constant 1 : index
    %131 = memref.load %arg2[%c6_66, %c1_67] : memref<12x4xf32, #tpu.memory_space<smem>>
    %132 = vector.broadcast %131 : f32 to vector<3x128xf32>
    %133 = arith.mulf %3, %132 : vector<3x128xf32>
    %134 = arith.addf %130, %133 : vector<3x128xf32>
    %c6_68 = arith.constant 6 : index
    %c2_69 = arith.constant 2 : index
    %135 = memref.load %arg2[%c6_68, %c2_69] : memref<12x4xf32, #tpu.memory_space<smem>>
    %136 = vector.broadcast %135 : f32 to vector<3x128xf32>
    %137 = arith.mulf %5, %136 : vector<3x128xf32>
    %138 = arith.addf %134, %137 : vector<3x128xf32>
    %c6_70 = arith.constant 6 : index
    %c3_71 = arith.constant 3 : index
    %139 = memref.load %arg2[%c6_70, %c3_71] : memref<12x4xf32, #tpu.memory_space<smem>>
    %140 = vector.broadcast %139 : f32 to vector<3x128xf32>
    %141 = arith.mulf %7, %140 : vector<3x128xf32>
    %142 = arith.addf %138, %141 : vector<3x128xf32>
    %c6_72 = arith.constant 6 : index
    %143 = memref.load %arg3[%c6_72] : memref<12xf32, #tpu.memory_space<smem>>
    %144 = vector.broadcast %143 : f32 to vector<3x128xf32>
    %145 = arith.addf %142, %144 : vector<3x128xf32>
    %cst_73 = arith.constant 0.000000e+00 : f32
    %146 = vector.broadcast %cst_73 : f32 to vector<3x128xf32>
    %147 = arith.maximumf %145, %146 : vector<3x128xf32>
    %c7 = arith.constant 7 : index
    %c0_74 = arith.constant 0 : index
    %148 = memref.load %arg2[%c7, %c0_74] : memref<12x4xf32, #tpu.memory_space<smem>>
    %149 = vector.broadcast %148 : f32 to vector<3x128xf32>
    %150 = arith.mulf %1, %149 : vector<3x128xf32>
    %c7_75 = arith.constant 7 : index
    %c1_76 = arith.constant 1 : index
    %151 = memref.load %arg2[%c7_75, %c1_76] : memref<12x4xf32, #tpu.memory_space<smem>>
    %152 = vector.broadcast %151 : f32 to vector<3x128xf32>
    %153 = arith.mulf %3, %152 : vector<3x128xf32>
    %154 = arith.addf %150, %153 : vector<3x128xf32>
    %c7_77 = arith.constant 7 : index
    %c2_78 = arith.constant 2 : index
    %155 = memref.load %arg2[%c7_77, %c2_78] : memref<12x4xf32, #tpu.memory_space<smem>>
    %156 = vector.broadcast %155 : f32 to vector<3x128xf32>
    %157 = arith.mulf %5, %156 : vector<3x128xf32>
    %158 = arith.addf %154, %157 : vector<3x128xf32>
    %c7_79 = arith.constant 7 : index
    %c3_80 = arith.constant 3 : index
    %159 = memref.load %arg2[%c7_79, %c3_80] : memref<12x4xf32, #tpu.memory_space<smem>>
    %160 = vector.broadcast %159 : f32 to vector<3x128xf32>
    %161 = arith.mulf %7, %160 : vector<3x128xf32>
    %162 = arith.addf %158, %161 : vector<3x128xf32>
    %c7_81 = arith.constant 7 : index
    %163 = memref.load %arg3[%c7_81] : memref<12xf32, #tpu.memory_space<smem>>
    %164 = vector.broadcast %163 : f32 to vector<3x128xf32>
    %165 = arith.addf %162, %164 : vector<3x128xf32>
    %cst_82 = arith.constant 0.000000e+00 : f32
    %166 = vector.broadcast %cst_82 : f32 to vector<3x128xf32>
    %167 = arith.maximumf %165, %166 : vector<3x128xf32>
    %c8 = arith.constant 8 : index
    %c0_83 = arith.constant 0 : index
    %168 = memref.load %arg2[%c8, %c0_83] : memref<12x4xf32, #tpu.memory_space<smem>>
    %169 = vector.broadcast %168 : f32 to vector<3x128xf32>
    %170 = arith.mulf %1, %169 : vector<3x128xf32>
    %c8_84 = arith.constant 8 : index
    %c1_85 = arith.constant 1 : index
    %171 = memref.load %arg2[%c8_84, %c1_85] : memref<12x4xf32, #tpu.memory_space<smem>>
    %172 = vector.broadcast %171 : f32 to vector<3x128xf32>
    %173 = arith.mulf %3, %172 : vector<3x128xf32>
    %174 = arith.addf %170, %173 : vector<3x128xf32>
    %c8_86 = arith.constant 8 : index
    %c2_87 = arith.constant 2 : index
    %175 = memref.load %arg2[%c8_86, %c2_87] : memref<12x4xf32, #tpu.memory_space<smem>>
    %176 = vector.broadcast %175 : f32 to vector<3x128xf32>
    %177 = arith.mulf %5, %176 : vector<3x128xf32>
    %178 = arith.addf %174, %177 : vector<3x128xf32>
    %c8_88 = arith.constant 8 : index
    %c3_89 = arith.constant 3 : index
    %179 = memref.load %arg2[%c8_88, %c3_89] : memref<12x4xf32, #tpu.memory_space<smem>>
    %180 = vector.broadcast %179 : f32 to vector<3x128xf32>
    %181 = arith.mulf %7, %180 : vector<3x128xf32>
    %182 = arith.addf %178, %181 : vector<3x128xf32>
    %c8_90 = arith.constant 8 : index
    %183 = memref.load %arg3[%c8_90] : memref<12xf32, #tpu.memory_space<smem>>
    %184 = vector.broadcast %183 : f32 to vector<3x128xf32>
    %185 = arith.addf %182, %184 : vector<3x128xf32>
    %cst_91 = arith.constant 0.000000e+00 : f32
    %186 = vector.broadcast %cst_91 : f32 to vector<3x128xf32>
    %187 = arith.maximumf %185, %186 : vector<3x128xf32>
    %c9 = arith.constant 9 : index
    %c0_92 = arith.constant 0 : index
    %188 = memref.load %arg2[%c9, %c0_92] : memref<12x4xf32, #tpu.memory_space<smem>>
    %189 = vector.broadcast %188 : f32 to vector<3x128xf32>
    %190 = arith.mulf %1, %189 : vector<3x128xf32>
    %c9_93 = arith.constant 9 : index
    %c1_94 = arith.constant 1 : index
    %191 = memref.load %arg2[%c9_93, %c1_94] : memref<12x4xf32, #tpu.memory_space<smem>>
    %192 = vector.broadcast %191 : f32 to vector<3x128xf32>
    %193 = arith.mulf %3, %192 : vector<3x128xf32>
    %194 = arith.addf %190, %193 : vector<3x128xf32>
    %c9_95 = arith.constant 9 : index
    %c2_96 = arith.constant 2 : index
    %195 = memref.load %arg2[%c9_95, %c2_96] : memref<12x4xf32, #tpu.memory_space<smem>>
    %196 = vector.broadcast %195 : f32 to vector<3x128xf32>
    %197 = arith.mulf %5, %196 : vector<3x128xf32>
    %198 = arith.addf %194, %197 : vector<3x128xf32>
    %c9_97 = arith.constant 9 : index
    %c3_98 = arith.constant 3 : index
    %199 = memref.load %arg2[%c9_97, %c3_98] : memref<12x4xf32, #tpu.memory_space<smem>>
    %200 = vector.broadcast %199 : f32 to vector<3x128xf32>
    %201 = arith.mulf %7, %200 : vector<3x128xf32>
    %202 = arith.addf %198, %201 : vector<3x128xf32>
    %c9_99 = arith.constant 9 : index
    %203 = memref.load %arg3[%c9_99] : memref<12xf32, #tpu.memory_space<smem>>
    %204 = vector.broadcast %203 : f32 to vector<3x128xf32>
    %205 = arith.addf %202, %204 : vector<3x128xf32>
    %cst_100 = arith.constant 0.000000e+00 : f32
    %206 = vector.broadcast %cst_100 : f32 to vector<3x128xf32>
    %207 = arith.maximumf %205, %206 : vector<3x128xf32>
    %c10 = arith.constant 10 : index
    %c0_101 = arith.constant 0 : index
    %208 = memref.load %arg2[%c10, %c0_101] : memref<12x4xf32, #tpu.memory_space<smem>>
    %209 = vector.broadcast %208 : f32 to vector<3x128xf32>
    %210 = arith.mulf %1, %209 : vector<3x128xf32>
    %c10_102 = arith.constant 10 : index
    %c1_103 = arith.constant 1 : index
    %211 = memref.load %arg2[%c10_102, %c1_103] : memref<12x4xf32, #tpu.memory_space<smem>>
    %212 = vector.broadcast %211 : f32 to vector<3x128xf32>
    %213 = arith.mulf %3, %212 : vector<3x128xf32>
    %214 = arith.addf %210, %213 : vector<3x128xf32>
    %c10_104 = arith.constant 10 : index
    %c2_105 = arith.constant 2 : index
    %215 = memref.load %arg2[%c10_104, %c2_105] : memref<12x4xf32, #tpu.memory_space<smem>>
    %216 = vector.broadcast %215 : f32 to vector<3x128xf32>
    %217 = arith.mulf %5, %216 : vector<3x128xf32>
    %218 = arith.addf %214, %217 : vector<3x128xf32>
    %c10_106 = arith.constant 10 : index
    %c3_107 = arith.constant 3 : index
    %219 = memref.load %arg2[%c10_106, %c3_107] : memref<12x4xf32, #tpu.memory_space<smem>>
    %220 = vector.broadcast %219 : f32 to vector<3x128xf32>
    %221 = arith.mulf %7, %220 : vector<3x128xf32>
    %222 = arith.addf %218, %221 : vector<3x128xf32>
    %c10_108 = arith.constant 10 : index
    %223 = memref.load %arg3[%c10_108] : memref<12xf32, #tpu.memory_space<smem>>
    %224 = vector.broadcast %223 : f32 to vector<3x128xf32>
    %225 = arith.addf %222, %224 : vector<3x128xf32>
    %cst_109 = arith.constant 0.000000e+00 : f32
    %226 = vector.broadcast %cst_109 : f32 to vector<3x128xf32>
    %227 = arith.maximumf %225, %226 : vector<3x128xf32>
    %c11 = arith.constant 11 : index
    %c0_110 = arith.constant 0 : index
    %228 = memref.load %arg2[%c11, %c0_110] : memref<12x4xf32, #tpu.memory_space<smem>>
    %229 = vector.broadcast %228 : f32 to vector<3x128xf32>
    %230 = arith.mulf %1, %229 : vector<3x128xf32>
    %c11_111 = arith.constant 11 : index
    %c1_112 = arith.constant 1 : index
    %231 = memref.load %arg2[%c11_111, %c1_112] : memref<12x4xf32, #tpu.memory_space<smem>>
    %232 = vector.broadcast %231 : f32 to vector<3x128xf32>
    %233 = arith.mulf %3, %232 : vector<3x128xf32>
    %234 = arith.addf %230, %233 : vector<3x128xf32>
    %c11_113 = arith.constant 11 : index
    %c2_114 = arith.constant 2 : index
    %235 = memref.load %arg2[%c11_113, %c2_114] : memref<12x4xf32, #tpu.memory_space<smem>>
    %236 = vector.broadcast %235 : f32 to vector<3x128xf32>
    %237 = arith.mulf %5, %236 : vector<3x128xf32>
    %238 = arith.addf %234, %237 : vector<3x128xf32>
    %c11_115 = arith.constant 11 : index
    %c3_116 = arith.constant 3 : index
    %239 = memref.load %arg2[%c11_115, %c3_116] : memref<12x4xf32, #tpu.memory_space<smem>>
    %240 = vector.broadcast %239 : f32 to vector<3x128xf32>
    %241 = arith.mulf %7, %240 : vector<3x128xf32>
    %242 = arith.addf %238, %241 : vector<3x128xf32>
    %c11_117 = arith.constant 11 : index
    %243 = memref.load %arg3[%c11_117] : memref<12xf32, #tpu.memory_space<smem>>
    %244 = vector.broadcast %243 : f32 to vector<3x128xf32>
    %245 = arith.addf %242, %244 : vector<3x128xf32>
    %cst_118 = arith.constant 0.000000e+00 : f32
    %246 = vector.broadcast %cst_118 : f32 to vector<3x128xf32>
    %247 = arith.maximumf %245, %246 : vector<3x128xf32>
    %c0_119 = arith.constant 0 : index
    %c0_120 = arith.constant 0 : index
    %248 = memref.load %arg4[%c0_119, %c0_120] : memref<8x12xf32, #tpu.memory_space<smem>>
    %249 = vector.broadcast %248 : f32 to vector<3x128xf32>
    %250 = arith.mulf %27, %249 : vector<3x128xf32>
    %c0_121 = arith.constant 0 : index
    %c1_122 = arith.constant 1 : index
    %251 = memref.load %arg4[%c0_121, %c1_122] : memref<8x12xf32, #tpu.memory_space<smem>>
    %252 = vector.broadcast %251 : f32 to vector<3x128xf32>
    %253 = arith.mulf %47, %252 : vector<3x128xf32>
    %254 = arith.addf %250, %253 : vector<3x128xf32>
    %c0_123 = arith.constant 0 : index
    %c2_124 = arith.constant 2 : index
    %255 = memref.load %arg4[%c0_123, %c2_124] : memref<8x12xf32, #tpu.memory_space<smem>>
    %256 = vector.broadcast %255 : f32 to vector<3x128xf32>
    %257 = arith.mulf %67, %256 : vector<3x128xf32>
    %258 = arith.addf %254, %257 : vector<3x128xf32>
    %c0_125 = arith.constant 0 : index
    %c3_126 = arith.constant 3 : index
    %259 = memref.load %arg4[%c0_125, %c3_126] : memref<8x12xf32, #tpu.memory_space<smem>>
    %260 = vector.broadcast %259 : f32 to vector<3x128xf32>
    %261 = arith.mulf %87, %260 : vector<3x128xf32>
    %262 = arith.addf %258, %261 : vector<3x128xf32>
    %c0_127 = arith.constant 0 : index
    %c4_128 = arith.constant 4 : index
    %263 = memref.load %arg4[%c0_127, %c4_128] : memref<8x12xf32, #tpu.memory_space<smem>>
    %264 = vector.broadcast %263 : f32 to vector<3x128xf32>
    %265 = arith.mulf %107, %264 : vector<3x128xf32>
    %266 = arith.addf %262, %265 : vector<3x128xf32>
    %c0_129 = arith.constant 0 : index
    %c5_130 = arith.constant 5 : index
    %267 = memref.load %arg4[%c0_129, %c5_130] : memref<8x12xf32, #tpu.memory_space<smem>>
    %268 = vector.broadcast %267 : f32 to vector<3x128xf32>
    %269 = arith.mulf %127, %268 : vector<3x128xf32>
    %270 = arith.addf %266, %269 : vector<3x128xf32>
    %c0_131 = arith.constant 0 : index
    %c6_132 = arith.constant 6 : index
    %271 = memref.load %arg4[%c0_131, %c6_132] : memref<8x12xf32, #tpu.memory_space<smem>>
    %272 = vector.broadcast %271 : f32 to vector<3x128xf32>
    %273 = arith.mulf %147, %272 : vector<3x128xf32>
    %274 = arith.addf %270, %273 : vector<3x128xf32>
    %c0_133 = arith.constant 0 : index
    %c7_134 = arith.constant 7 : index
    %275 = memref.load %arg4[%c0_133, %c7_134] : memref<8x12xf32, #tpu.memory_space<smem>>
    %276 = vector.broadcast %275 : f32 to vector<3x128xf32>
    %277 = arith.mulf %167, %276 : vector<3x128xf32>
    %278 = arith.addf %274, %277 : vector<3x128xf32>
    %c0_135 = arith.constant 0 : index
    %c8_136 = arith.constant 8 : index
    %279 = memref.load %arg4[%c0_135, %c8_136] : memref<8x12xf32, #tpu.memory_space<smem>>
    %280 = vector.broadcast %279 : f32 to vector<3x128xf32>
    %281 = arith.mulf %187, %280 : vector<3x128xf32>
    %282 = arith.addf %278, %281 : vector<3x128xf32>
    %c0_137 = arith.constant 0 : index
    %c9_138 = arith.constant 9 : index
    %283 = memref.load %arg4[%c0_137, %c9_138] : memref<8x12xf32, #tpu.memory_space<smem>>
    %284 = vector.broadcast %283 : f32 to vector<3x128xf32>
    %285 = arith.mulf %207, %284 : vector<3x128xf32>
    %286 = arith.addf %282, %285 : vector<3x128xf32>
    %c0_139 = arith.constant 0 : index
    %c10_140 = arith.constant 10 : index
    %287 = memref.load %arg4[%c0_139, %c10_140] : memref<8x12xf32, #tpu.memory_space<smem>>
    %288 = vector.broadcast %287 : f32 to vector<3x128xf32>
    %289 = arith.mulf %227, %288 : vector<3x128xf32>
    %290 = arith.addf %286, %289 : vector<3x128xf32>
    %c0_141 = arith.constant 0 : index
    %c11_142 = arith.constant 11 : index
    %291 = memref.load %arg4[%c0_141, %c11_142] : memref<8x12xf32, #tpu.memory_space<smem>>
    %292 = vector.broadcast %291 : f32 to vector<3x128xf32>
    %293 = arith.mulf %247, %292 : vector<3x128xf32>
    %294 = arith.addf %290, %293 : vector<3x128xf32>
    %c0_143 = arith.constant 0 : index
    %295 = memref.load %arg5[%c0_143] : memref<8xf32, #tpu.memory_space<smem>>
    %296 = vector.broadcast %295 : f32 to vector<3x128xf32>
    %297 = arith.addf %294, %296 : vector<3x128xf32>
    %cst_144 = arith.constant 0.000000e+00 : f32
    %298 = vector.broadcast %cst_144 : f32 to vector<3x128xf32>
    %299 = arith.maximumf %297, %298 : vector<3x128xf32>
    %c1_145 = arith.constant 1 : index
    %c0_146 = arith.constant 0 : index
    %300 = memref.load %arg4[%c1_145, %c0_146] : memref<8x12xf32, #tpu.memory_space<smem>>
    %301 = vector.broadcast %300 : f32 to vector<3x128xf32>
    %302 = arith.mulf %27, %301 : vector<3x128xf32>
    %c1_147 = arith.constant 1 : index
    %c1_148 = arith.constant 1 : index
    %303 = memref.load %arg4[%c1_147, %c1_148] : memref<8x12xf32, #tpu.memory_space<smem>>
    %304 = vector.broadcast %303 : f32 to vector<3x128xf32>
    %305 = arith.mulf %47, %304 : vector<3x128xf32>
    %306 = arith.addf %302, %305 : vector<3x128xf32>
    %c1_149 = arith.constant 1 : index
    %c2_150 = arith.constant 2 : index
    %307 = memref.load %arg4[%c1_149, %c2_150] : memref<8x12xf32, #tpu.memory_space<smem>>
    %308 = vector.broadcast %307 : f32 to vector<3x128xf32>
    %309 = arith.mulf %67, %308 : vector<3x128xf32>
    %310 = arith.addf %306, %309 : vector<3x128xf32>
    %c1_151 = arith.constant 1 : index
    %c3_152 = arith.constant 3 : index
    %311 = memref.load %arg4[%c1_151, %c3_152] : memref<8x12xf32, #tpu.memory_space<smem>>
    %312 = vector.broadcast %311 : f32 to vector<3x128xf32>
    %313 = arith.mulf %87, %312 : vector<3x128xf32>
    %314 = arith.addf %310, %313 : vector<3x128xf32>
    %c1_153 = arith.constant 1 : index
    %c4_154 = arith.constant 4 : index
    %315 = memref.load %arg4[%c1_153, %c4_154] : memref<8x12xf32, #tpu.memory_space<smem>>
    %316 = vector.broadcast %315 : f32 to vector<3x128xf32>
    %317 = arith.mulf %107, %316 : vector<3x128xf32>
    %318 = arith.addf %314, %317 : vector<3x128xf32>
    %c1_155 = arith.constant 1 : index
    %c5_156 = arith.constant 5 : index
    %319 = memref.load %arg4[%c1_155, %c5_156] : memref<8x12xf32, #tpu.memory_space<smem>>
    %320 = vector.broadcast %319 : f32 to vector<3x128xf32>
    %321 = arith.mulf %127, %320 : vector<3x128xf32>
    %322 = arith.addf %318, %321 : vector<3x128xf32>
    %c1_157 = arith.constant 1 : index
    %c6_158 = arith.constant 6 : index
    %323 = memref.load %arg4[%c1_157, %c6_158] : memref<8x12xf32, #tpu.memory_space<smem>>
    %324 = vector.broadcast %323 : f32 to vector<3x128xf32>
    %325 = arith.mulf %147, %324 : vector<3x128xf32>
    %326 = arith.addf %322, %325 : vector<3x128xf32>
    %c1_159 = arith.constant 1 : index
    %c7_160 = arith.constant 7 : index
    %327 = memref.load %arg4[%c1_159, %c7_160] : memref<8x12xf32, #tpu.memory_space<smem>>
    %328 = vector.broadcast %327 : f32 to vector<3x128xf32>
    %329 = arith.mulf %167, %328 : vector<3x128xf32>
    %330 = arith.addf %326, %329 : vector<3x128xf32>
    %c1_161 = arith.constant 1 : index
    %c8_162 = arith.constant 8 : index
    %331 = memref.load %arg4[%c1_161, %c8_162] : memref<8x12xf32, #tpu.memory_space<smem>>
    %332 = vector.broadcast %331 : f32 to vector<3x128xf32>
    %333 = arith.mulf %187, %332 : vector<3x128xf32>
    %334 = arith.addf %330, %333 : vector<3x128xf32>
    %c1_163 = arith.constant 1 : index
    %c9_164 = arith.constant 9 : index
    %335 = memref.load %arg4[%c1_163, %c9_164] : memref<8x12xf32, #tpu.memory_space<smem>>
    %336 = vector.broadcast %335 : f32 to vector<3x128xf32>
    %337 = arith.mulf %207, %336 : vector<3x128xf32>
    %338 = arith.addf %334, %337 : vector<3x128xf32>
    %c1_165 = arith.constant 1 : index
    %c10_166 = arith.constant 10 : index
    %339 = memref.load %arg4[%c1_165, %c10_166] : memref<8x12xf32, #tpu.memory_space<smem>>
    %340 = vector.broadcast %339 : f32 to vector<3x128xf32>
    %341 = arith.mulf %227, %340 : vector<3x128xf32>
    %342 = arith.addf %338, %341 : vector<3x128xf32>
    %c1_167 = arith.constant 1 : index
    %c11_168 = arith.constant 11 : index
    %343 = memref.load %arg4[%c1_167, %c11_168] : memref<8x12xf32, #tpu.memory_space<smem>>
    %344 = vector.broadcast %343 : f32 to vector<3x128xf32>
    %345 = arith.mulf %247, %344 : vector<3x128xf32>
    %346 = arith.addf %342, %345 : vector<3x128xf32>
    %c1_169 = arith.constant 1 : index
    %347 = memref.load %arg5[%c1_169] : memref<8xf32, #tpu.memory_space<smem>>
    %348 = vector.broadcast %347 : f32 to vector<3x128xf32>
    %349 = arith.addf %346, %348 : vector<3x128xf32>
    %cst_170 = arith.constant 0.000000e+00 : f32
    %350 = vector.broadcast %cst_170 : f32 to vector<3x128xf32>
    %351 = arith.maximumf %349, %350 : vector<3x128xf32>
    %c2_171 = arith.constant 2 : index
    %c0_172 = arith.constant 0 : index
    %352 = memref.load %arg4[%c2_171, %c0_172] : memref<8x12xf32, #tpu.memory_space<smem>>
    %353 = vector.broadcast %352 : f32 to vector<3x128xf32>
    %354 = arith.mulf %27, %353 : vector<3x128xf32>
    %c2_173 = arith.constant 2 : index
    %c1_174 = arith.constant 1 : index
    %355 = memref.load %arg4[%c2_173, %c1_174] : memref<8x12xf32, #tpu.memory_space<smem>>
    %356 = vector.broadcast %355 : f32 to vector<3x128xf32>
    %357 = arith.mulf %47, %356 : vector<3x128xf32>
    %358 = arith.addf %354, %357 : vector<3x128xf32>
    %c2_175 = arith.constant 2 : index
    %c2_176 = arith.constant 2 : index
    %359 = memref.load %arg4[%c2_175, %c2_176] : memref<8x12xf32, #tpu.memory_space<smem>>
    %360 = vector.broadcast %359 : f32 to vector<3x128xf32>
    %361 = arith.mulf %67, %360 : vector<3x128xf32>
    %362 = arith.addf %358, %361 : vector<3x128xf32>
    %c2_177 = arith.constant 2 : index
    %c3_178 = arith.constant 3 : index
    %363 = memref.load %arg4[%c2_177, %c3_178] : memref<8x12xf32, #tpu.memory_space<smem>>
    %364 = vector.broadcast %363 : f32 to vector<3x128xf32>
    %365 = arith.mulf %87, %364 : vector<3x128xf32>
    %366 = arith.addf %362, %365 : vector<3x128xf32>
    %c2_179 = arith.constant 2 : index
    %c4_180 = arith.constant 4 : index
    %367 = memref.load %arg4[%c2_179, %c4_180] : memref<8x12xf32, #tpu.memory_space<smem>>
    %368 = vector.broadcast %367 : f32 to vector<3x128xf32>
    %369 = arith.mulf %107, %368 : vector<3x128xf32>
    %370 = arith.addf %366, %369 : vector<3x128xf32>
    %c2_181 = arith.constant 2 : index
    %c5_182 = arith.constant 5 : index
    %371 = memref.load %arg4[%c2_181, %c5_182] : memref<8x12xf32, #tpu.memory_space<smem>>
    %372 = vector.broadcast %371 : f32 to vector<3x128xf32>
    %373 = arith.mulf %127, %372 : vector<3x128xf32>
    %374 = arith.addf %370, %373 : vector<3x128xf32>
    %c2_183 = arith.constant 2 : index
    %c6_184 = arith.constant 6 : index
    %375 = memref.load %arg4[%c2_183, %c6_184] : memref<8x12xf32, #tpu.memory_space<smem>>
    %376 = vector.broadcast %375 : f32 to vector<3x128xf32>
    %377 = arith.mulf %147, %376 : vector<3x128xf32>
    %378 = arith.addf %374, %377 : vector<3x128xf32>
    %c2_185 = arith.constant 2 : index
    %c7_186 = arith.constant 7 : index
    %379 = memref.load %arg4[%c2_185, %c7_186] : memref<8x12xf32, #tpu.memory_space<smem>>
    %380 = vector.broadcast %379 : f32 to vector<3x128xf32>
    %381 = arith.mulf %167, %380 : vector<3x128xf32>
    %382 = arith.addf %378, %381 : vector<3x128xf32>
    %c2_187 = arith.constant 2 : index
    %c8_188 = arith.constant 8 : index
    %383 = memref.load %arg4[%c2_187, %c8_188] : memref<8x12xf32, #tpu.memory_space<smem>>
    %384 = vector.broadcast %383 : f32 to vector<3x128xf32>
    %385 = arith.mulf %187, %384 : vector<3x128xf32>
    %386 = arith.addf %382, %385 : vector<3x128xf32>
    %c2_189 = arith.constant 2 : index
    %c9_190 = arith.constant 9 : index
    %387 = memref.load %arg4[%c2_189, %c9_190] : memref<8x12xf32, #tpu.memory_space<smem>>
    %388 = vector.broadcast %387 : f32 to vector<3x128xf32>
    %389 = arith.mulf %207, %388 : vector<3x128xf32>
    %390 = arith.addf %386, %389 : vector<3x128xf32>
    %c2_191 = arith.constant 2 : index
    %c10_192 = arith.constant 10 : index
    %391 = memref.load %arg4[%c2_191, %c10_192] : memref<8x12xf32, #tpu.memory_space<smem>>
    %392 = vector.broadcast %391 : f32 to vector<3x128xf32>
    %393 = arith.mulf %227, %392 : vector<3x128xf32>
    %394 = arith.addf %390, %393 : vector<3x128xf32>
    %c2_193 = arith.constant 2 : index
    %c11_194 = arith.constant 11 : index
    %395 = memref.load %arg4[%c2_193, %c11_194] : memref<8x12xf32, #tpu.memory_space<smem>>
    %396 = vector.broadcast %395 : f32 to vector<3x128xf32>
    %397 = arith.mulf %247, %396 : vector<3x128xf32>
    %398 = arith.addf %394, %397 : vector<3x128xf32>
    %c2_195 = arith.constant 2 : index
    %399 = memref.load %arg5[%c2_195] : memref<8xf32, #tpu.memory_space<smem>>
    %400 = vector.broadcast %399 : f32 to vector<3x128xf32>
    %401 = arith.addf %398, %400 : vector<3x128xf32>
    %cst_196 = arith.constant 0.000000e+00 : f32
    %402 = vector.broadcast %cst_196 : f32 to vector<3x128xf32>
    %403 = arith.maximumf %401, %402 : vector<3x128xf32>
    %c3_197 = arith.constant 3 : index
    %c0_198 = arith.constant 0 : index
    %404 = memref.load %arg4[%c3_197, %c0_198] : memref<8x12xf32, #tpu.memory_space<smem>>
    %405 = vector.broadcast %404 : f32 to vector<3x128xf32>
    %406 = arith.mulf %27, %405 : vector<3x128xf32>
    %c3_199 = arith.constant 3 : index
    %c1_200 = arith.constant 1 : index
    %407 = memref.load %arg4[%c3_199, %c1_200] : memref<8x12xf32, #tpu.memory_space<smem>>
    %408 = vector.broadcast %407 : f32 to vector<3x128xf32>
    %409 = arith.mulf %47, %408 : vector<3x128xf32>
    %410 = arith.addf %406, %409 : vector<3x128xf32>
    %c3_201 = arith.constant 3 : index
    %c2_202 = arith.constant 2 : index
    %411 = memref.load %arg4[%c3_201, %c2_202] : memref<8x12xf32, #tpu.memory_space<smem>>
    %412 = vector.broadcast %411 : f32 to vector<3x128xf32>
    %413 = arith.mulf %67, %412 : vector<3x128xf32>
    %414 = arith.addf %410, %413 : vector<3x128xf32>
    %c3_203 = arith.constant 3 : index
    %c3_204 = arith.constant 3 : index
    %415 = memref.load %arg4[%c3_203, %c3_204] : memref<8x12xf32, #tpu.memory_space<smem>>
    %416 = vector.broadcast %415 : f32 to vector<3x128xf32>
    %417 = arith.mulf %87, %416 : vector<3x128xf32>
    %418 = arith.addf %414, %417 : vector<3x128xf32>
    %c3_205 = arith.constant 3 : index
    %c4_206 = arith.constant 4 : index
    %419 = memref.load %arg4[%c3_205, %c4_206] : memref<8x12xf32, #tpu.memory_space<smem>>
    %420 = vector.broadcast %419 : f32 to vector<3x128xf32>
    %421 = arith.mulf %107, %420 : vector<3x128xf32>
    %422 = arith.addf %418, %421 : vector<3x128xf32>
    %c3_207 = arith.constant 3 : index
    %c5_208 = arith.constant 5 : index
    %423 = memref.load %arg4[%c3_207, %c5_208] : memref<8x12xf32, #tpu.memory_space<smem>>
    %424 = vector.broadcast %423 : f32 to vector<3x128xf32>
    %425 = arith.mulf %127, %424 : vector<3x128xf32>
    %426 = arith.addf %422, %425 : vector<3x128xf32>
    %c3_209 = arith.constant 3 : index
    %c6_210 = arith.constant 6 : index
    %427 = memref.load %arg4[%c3_209, %c6_210] : memref<8x12xf32, #tpu.memory_space<smem>>
    %428 = vector.broadcast %427 : f32 to vector<3x128xf32>
    %429 = arith.mulf %147, %428 : vector<3x128xf32>
    %430 = arith.addf %426, %429 : vector<3x128xf32>
    %c3_211 = arith.constant 3 : index
    %c7_212 = arith.constant 7 : index
    %431 = memref.load %arg4[%c3_211, %c7_212] : memref<8x12xf32, #tpu.memory_space<smem>>
    %432 = vector.broadcast %431 : f32 to vector<3x128xf32>
    %433 = arith.mulf %167, %432 : vector<3x128xf32>
    %434 = arith.addf %430, %433 : vector<3x128xf32>
    %c3_213 = arith.constant 3 : index
    %c8_214 = arith.constant 8 : index
    %435 = memref.load %arg4[%c3_213, %c8_214] : memref<8x12xf32, #tpu.memory_space<smem>>
    %436 = vector.broadcast %435 : f32 to vector<3x128xf32>
    %437 = arith.mulf %187, %436 : vector<3x128xf32>
    %438 = arith.addf %434, %437 : vector<3x128xf32>
    %c3_215 = arith.constant 3 : index
    %c9_216 = arith.constant 9 : index
    %439 = memref.load %arg4[%c3_215, %c9_216] : memref<8x12xf32, #tpu.memory_space<smem>>
    %440 = vector.broadcast %439 : f32 to vector<3x128xf32>
    %441 = arith.mulf %207, %440 : vector<3x128xf32>
    %442 = arith.addf %438, %441 : vector<3x128xf32>
    %c3_217 = arith.constant 3 : index
    %c10_218 = arith.constant 10 : index
    %443 = memref.load %arg4[%c3_217, %c10_218] : memref<8x12xf32, #tpu.memory_space<smem>>
    %444 = vector.broadcast %443 : f32 to vector<3x128xf32>
    %445 = arith.mulf %227, %444 : vector<3x128xf32>
    %446 = arith.addf %442, %445 : vector<3x128xf32>
    %c3_219 = arith.constant 3 : index
    %c11_220 = arith.constant 11 : index
    %447 = memref.load %arg4[%c3_219, %c11_220] : memref<8x12xf32, #tpu.memory_space<smem>>
    %448 = vector.broadcast %447 : f32 to vector<3x128xf32>
    %449 = arith.mulf %247, %448 : vector<3x128xf32>
    %450 = arith.addf %446, %449 : vector<3x128xf32>
    %c3_221 = arith.constant 3 : index
    %451 = memref.load %arg5[%c3_221] : memref<8xf32, #tpu.memory_space<smem>>
    %452 = vector.broadcast %451 : f32 to vector<3x128xf32>
    %453 = arith.addf %450, %452 : vector<3x128xf32>
    %cst_222 = arith.constant 0.000000e+00 : f32
    %454 = vector.broadcast %cst_222 : f32 to vector<3x128xf32>
    %455 = arith.maximumf %453, %454 : vector<3x128xf32>
    %c4_223 = arith.constant 4 : index
    %c0_224 = arith.constant 0 : index
    %456 = memref.load %arg4[%c4_223, %c0_224] : memref<8x12xf32, #tpu.memory_space<smem>>
    %457 = vector.broadcast %456 : f32 to vector<3x128xf32>
    %458 = arith.mulf %27, %457 : vector<3x128xf32>
    %c4_225 = arith.constant 4 : index
    %c1_226 = arith.constant 1 : index
    %459 = memref.load %arg4[%c4_225, %c1_226] : memref<8x12xf32, #tpu.memory_space<smem>>
    %460 = vector.broadcast %459 : f32 to vector<3x128xf32>
    %461 = arith.mulf %47, %460 : vector<3x128xf32>
    %462 = arith.addf %458, %461 : vector<3x128xf32>
    %c4_227 = arith.constant 4 : index
    %c2_228 = arith.constant 2 : index
    %463 = memref.load %arg4[%c4_227, %c2_228] : memref<8x12xf32, #tpu.memory_space<smem>>
    %464 = vector.broadcast %463 : f32 to vector<3x128xf32>
    %465 = arith.mulf %67, %464 : vector<3x128xf32>
    %466 = arith.addf %462, %465 : vector<3x128xf32>
    %c4_229 = arith.constant 4 : index
    %c3_230 = arith.constant 3 : index
    %467 = memref.load %arg4[%c4_229, %c3_230] : memref<8x12xf32, #tpu.memory_space<smem>>
    %468 = vector.broadcast %467 : f32 to vector<3x128xf32>
    %469 = arith.mulf %87, %468 : vector<3x128xf32>
    %470 = arith.addf %466, %469 : vector<3x128xf32>
    %c4_231 = arith.constant 4 : index
    %c4_232 = arith.constant 4 : index
    %471 = memref.load %arg4[%c4_231, %c4_232] : memref<8x12xf32, #tpu.memory_space<smem>>
    %472 = vector.broadcast %471 : f32 to vector<3x128xf32>
    %473 = arith.mulf %107, %472 : vector<3x128xf32>
    %474 = arith.addf %470, %473 : vector<3x128xf32>
    %c4_233 = arith.constant 4 : index
    %c5_234 = arith.constant 5 : index
    %475 = memref.load %arg4[%c4_233, %c5_234] : memref<8x12xf32, #tpu.memory_space<smem>>
    %476 = vector.broadcast %475 : f32 to vector<3x128xf32>
    %477 = arith.mulf %127, %476 : vector<3x128xf32>
    %478 = arith.addf %474, %477 : vector<3x128xf32>
    %c4_235 = arith.constant 4 : index
    %c6_236 = arith.constant 6 : index
    %479 = memref.load %arg4[%c4_235, %c6_236] : memref<8x12xf32, #tpu.memory_space<smem>>
    %480 = vector.broadcast %479 : f32 to vector<3x128xf32>
    %481 = arith.mulf %147, %480 : vector<3x128xf32>
    %482 = arith.addf %478, %481 : vector<3x128xf32>
    %c4_237 = arith.constant 4 : index
    %c7_238 = arith.constant 7 : index
    %483 = memref.load %arg4[%c4_237, %c7_238] : memref<8x12xf32, #tpu.memory_space<smem>>
    %484 = vector.broadcast %483 : f32 to vector<3x128xf32>
    %485 = arith.mulf %167, %484 : vector<3x128xf32>
    %486 = arith.addf %482, %485 : vector<3x128xf32>
    %c4_239 = arith.constant 4 : index
    %c8_240 = arith.constant 8 : index
    %487 = memref.load %arg4[%c4_239, %c8_240] : memref<8x12xf32, #tpu.memory_space<smem>>
    %488 = vector.broadcast %487 : f32 to vector<3x128xf32>
    %489 = arith.mulf %187, %488 : vector<3x128xf32>
    %490 = arith.addf %486, %489 : vector<3x128xf32>
    %c4_241 = arith.constant 4 : index
    %c9_242 = arith.constant 9 : index
    %491 = memref.load %arg4[%c4_241, %c9_242] : memref<8x12xf32, #tpu.memory_space<smem>>
    %492 = vector.broadcast %491 : f32 to vector<3x128xf32>
    %493 = arith.mulf %207, %492 : vector<3x128xf32>
    %494 = arith.addf %490, %493 : vector<3x128xf32>
    %c4_243 = arith.constant 4 : index
    %c10_244 = arith.constant 10 : index
    %495 = memref.load %arg4[%c4_243, %c10_244] : memref<8x12xf32, #tpu.memory_space<smem>>
    %496 = vector.broadcast %495 : f32 to vector<3x128xf32>
    %497 = arith.mulf %227, %496 : vector<3x128xf32>
    %498 = arith.addf %494, %497 : vector<3x128xf32>
    %c4_245 = arith.constant 4 : index
    %c11_246 = arith.constant 11 : index
    %499 = memref.load %arg4[%c4_245, %c11_246] : memref<8x12xf32, #tpu.memory_space<smem>>
    %500 = vector.broadcast %499 : f32 to vector<3x128xf32>
    %501 = arith.mulf %247, %500 : vector<3x128xf32>
    %502 = arith.addf %498, %501 : vector<3x128xf32>
    %c4_247 = arith.constant 4 : index
    %503 = memref.load %arg5[%c4_247] : memref<8xf32, #tpu.memory_space<smem>>
    %504 = vector.broadcast %503 : f32 to vector<3x128xf32>
    %505 = arith.addf %502, %504 : vector<3x128xf32>
    %cst_248 = arith.constant 0.000000e+00 : f32
    %506 = vector.broadcast %cst_248 : f32 to vector<3x128xf32>
    %507 = arith.maximumf %505, %506 : vector<3x128xf32>
    %c5_249 = arith.constant 5 : index
    %c0_250 = arith.constant 0 : index
    %508 = memref.load %arg4[%c5_249, %c0_250] : memref<8x12xf32, #tpu.memory_space<smem>>
    %509 = vector.broadcast %508 : f32 to vector<3x128xf32>
    %510 = arith.mulf %27, %509 : vector<3x128xf32>
    %c5_251 = arith.constant 5 : index
    %c1_252 = arith.constant 1 : index
    %511 = memref.load %arg4[%c5_251, %c1_252] : memref<8x12xf32, #tpu.memory_space<smem>>
    %512 = vector.broadcast %511 : f32 to vector<3x128xf32>
    %513 = arith.mulf %47, %512 : vector<3x128xf32>
    %514 = arith.addf %510, %513 : vector<3x128xf32>
    %c5_253 = arith.constant 5 : index
    %c2_254 = arith.constant 2 : index
    %515 = memref.load %arg4[%c5_253, %c2_254] : memref<8x12xf32, #tpu.memory_space<smem>>
    %516 = vector.broadcast %515 : f32 to vector<3x128xf32>
    %517 = arith.mulf %67, %516 : vector<3x128xf32>
    %518 = arith.addf %514, %517 : vector<3x128xf32>
    %c5_255 = arith.constant 5 : index
    %c3_256 = arith.constant 3 : index
    %519 = memref.load %arg4[%c5_255, %c3_256] : memref<8x12xf32, #tpu.memory_space<smem>>
    %520 = vector.broadcast %519 : f32 to vector<3x128xf32>
    %521 = arith.mulf %87, %520 : vector<3x128xf32>
    %522 = arith.addf %518, %521 : vector<3x128xf32>
    %c5_257 = arith.constant 5 : index
    %c4_258 = arith.constant 4 : index
    %523 = memref.load %arg4[%c5_257, %c4_258] : memref<8x12xf32, #tpu.memory_space<smem>>
    %524 = vector.broadcast %523 : f32 to vector<3x128xf32>
    %525 = arith.mulf %107, %524 : vector<3x128xf32>
    %526 = arith.addf %522, %525 : vector<3x128xf32>
    %c5_259 = arith.constant 5 : index
    %c5_260 = arith.constant 5 : index
    %527 = memref.load %arg4[%c5_259, %c5_260] : memref<8x12xf32, #tpu.memory_space<smem>>
    %528 = vector.broadcast %527 : f32 to vector<3x128xf32>
    %529 = arith.mulf %127, %528 : vector<3x128xf32>
    %530 = arith.addf %526, %529 : vector<3x128xf32>
    %c5_261 = arith.constant 5 : index
    %c6_262 = arith.constant 6 : index
    %531 = memref.load %arg4[%c5_261, %c6_262] : memref<8x12xf32, #tpu.memory_space<smem>>
    %532 = vector.broadcast %531 : f32 to vector<3x128xf32>
    %533 = arith.mulf %147, %532 : vector<3x128xf32>
    %534 = arith.addf %530, %533 : vector<3x128xf32>
    %c5_263 = arith.constant 5 : index
    %c7_264 = arith.constant 7 : index
    %535 = memref.load %arg4[%c5_263, %c7_264] : memref<8x12xf32, #tpu.memory_space<smem>>
    %536 = vector.broadcast %535 : f32 to vector<3x128xf32>
    %537 = arith.mulf %167, %536 : vector<3x128xf32>
    %538 = arith.addf %534, %537 : vector<3x128xf32>
    %c5_265 = arith.constant 5 : index
    %c8_266 = arith.constant 8 : index
    %539 = memref.load %arg4[%c5_265, %c8_266] : memref<8x12xf32, #tpu.memory_space<smem>>
    %540 = vector.broadcast %539 : f32 to vector<3x128xf32>
    %541 = arith.mulf %187, %540 : vector<3x128xf32>
    %542 = arith.addf %538, %541 : vector<3x128xf32>
    %c5_267 = arith.constant 5 : index
    %c9_268 = arith.constant 9 : index
    %543 = memref.load %arg4[%c5_267, %c9_268] : memref<8x12xf32, #tpu.memory_space<smem>>
    %544 = vector.broadcast %543 : f32 to vector<3x128xf32>
    %545 = arith.mulf %207, %544 : vector<3x128xf32>
    %546 = arith.addf %542, %545 : vector<3x128xf32>
    %c5_269 = arith.constant 5 : index
    %c10_270 = arith.constant 10 : index
    %547 = memref.load %arg4[%c5_269, %c10_270] : memref<8x12xf32, #tpu.memory_space<smem>>
    %548 = vector.broadcast %547 : f32 to vector<3x128xf32>
    %549 = arith.mulf %227, %548 : vector<3x128xf32>
    %550 = arith.addf %546, %549 : vector<3x128xf32>
    %c5_271 = arith.constant 5 : index
    %c11_272 = arith.constant 11 : index
    %551 = memref.load %arg4[%c5_271, %c11_272] : memref<8x12xf32, #tpu.memory_space<smem>>
    %552 = vector.broadcast %551 : f32 to vector<3x128xf32>
    %553 = arith.mulf %247, %552 : vector<3x128xf32>
    %554 = arith.addf %550, %553 : vector<3x128xf32>
    %c5_273 = arith.constant 5 : index
    %555 = memref.load %arg5[%c5_273] : memref<8xf32, #tpu.memory_space<smem>>
    %556 = vector.broadcast %555 : f32 to vector<3x128xf32>
    %557 = arith.addf %554, %556 : vector<3x128xf32>
    %cst_274 = arith.constant 0.000000e+00 : f32
    %558 = vector.broadcast %cst_274 : f32 to vector<3x128xf32>
    %559 = arith.maximumf %557, %558 : vector<3x128xf32>
    %c6_275 = arith.constant 6 : index
    %c0_276 = arith.constant 0 : index
    %560 = memref.load %arg4[%c6_275, %c0_276] : memref<8x12xf32, #tpu.memory_space<smem>>
    %561 = vector.broadcast %560 : f32 to vector<3x128xf32>
    %562 = arith.mulf %27, %561 : vector<3x128xf32>
    %c6_277 = arith.constant 6 : index
    %c1_278 = arith.constant 1 : index
    %563 = memref.load %arg4[%c6_277, %c1_278] : memref<8x12xf32, #tpu.memory_space<smem>>
    %564 = vector.broadcast %563 : f32 to vector<3x128xf32>
    %565 = arith.mulf %47, %564 : vector<3x128xf32>
    %566 = arith.addf %562, %565 : vector<3x128xf32>
    %c6_279 = arith.constant 6 : index
    %c2_280 = arith.constant 2 : index
    %567 = memref.load %arg4[%c6_279, %c2_280] : memref<8x12xf32, #tpu.memory_space<smem>>
    %568 = vector.broadcast %567 : f32 to vector<3x128xf32>
    %569 = arith.mulf %67, %568 : vector<3x128xf32>
    %570 = arith.addf %566, %569 : vector<3x128xf32>
    %c6_281 = arith.constant 6 : index
    %c3_282 = arith.constant 3 : index
    %571 = memref.load %arg4[%c6_281, %c3_282] : memref<8x12xf32, #tpu.memory_space<smem>>
    %572 = vector.broadcast %571 : f32 to vector<3x128xf32>
    %573 = arith.mulf %87, %572 : vector<3x128xf32>
    %574 = arith.addf %570, %573 : vector<3x128xf32>
    %c6_283 = arith.constant 6 : index
    %c4_284 = arith.constant 4 : index
    %575 = memref.load %arg4[%c6_283, %c4_284] : memref<8x12xf32, #tpu.memory_space<smem>>
    %576 = vector.broadcast %575 : f32 to vector<3x128xf32>
    %577 = arith.mulf %107, %576 : vector<3x128xf32>
    %578 = arith.addf %574, %577 : vector<3x128xf32>
    %c6_285 = arith.constant 6 : index
    %c5_286 = arith.constant 5 : index
    %579 = memref.load %arg4[%c6_285, %c5_286] : memref<8x12xf32, #tpu.memory_space<smem>>
    %580 = vector.broadcast %579 : f32 to vector<3x128xf32>
    %581 = arith.mulf %127, %580 : vector<3x128xf32>
    %582 = arith.addf %578, %581 : vector<3x128xf32>
    %c6_287 = arith.constant 6 : index
    %c6_288 = arith.constant 6 : index
    %583 = memref.load %arg4[%c6_287, %c6_288] : memref<8x12xf32, #tpu.memory_space<smem>>
    %584 = vector.broadcast %583 : f32 to vector<3x128xf32>
    %585 = arith.mulf %147, %584 : vector<3x128xf32>
    %586 = arith.addf %582, %585 : vector<3x128xf32>
    %c6_289 = arith.constant 6 : index
    %c7_290 = arith.constant 7 : index
    %587 = memref.load %arg4[%c6_289, %c7_290] : memref<8x12xf32, #tpu.memory_space<smem>>
    %588 = vector.broadcast %587 : f32 to vector<3x128xf32>
    %589 = arith.mulf %167, %588 : vector<3x128xf32>
    %590 = arith.addf %586, %589 : vector<3x128xf32>
    %c6_291 = arith.constant 6 : index
    %c8_292 = arith.constant 8 : index
    %591 = memref.load %arg4[%c6_291, %c8_292] : memref<8x12xf32, #tpu.memory_space<smem>>
    %592 = vector.broadcast %591 : f32 to vector<3x128xf32>
    %593 = arith.mulf %187, %592 : vector<3x128xf32>
    %594 = arith.addf %590, %593 : vector<3x128xf32>
    %c6_293 = arith.constant 6 : index
    %c9_294 = arith.constant 9 : index
    %595 = memref.load %arg4[%c6_293, %c9_294] : memref<8x12xf32, #tpu.memory_space<smem>>
    %596 = vector.broadcast %595 : f32 to vector<3x128xf32>
    %597 = arith.mulf %207, %596 : vector<3x128xf32>
    %598 = arith.addf %594, %597 : vector<3x128xf32>
    %c6_295 = arith.constant 6 : index
    %c10_296 = arith.constant 10 : index
    %599 = memref.load %arg4[%c6_295, %c10_296] : memref<8x12xf32, #tpu.memory_space<smem>>
    %600 = vector.broadcast %599 : f32 to vector<3x128xf32>
    %601 = arith.mulf %227, %600 : vector<3x128xf32>
    %602 = arith.addf %598, %601 : vector<3x128xf32>
    %c6_297 = arith.constant 6 : index
    %c11_298 = arith.constant 11 : index
    %603 = memref.load %arg4[%c6_297, %c11_298] : memref<8x12xf32, #tpu.memory_space<smem>>
    %604 = vector.broadcast %603 : f32 to vector<3x128xf32>
    %605 = arith.mulf %247, %604 : vector<3x128xf32>
    %606 = arith.addf %602, %605 : vector<3x128xf32>
    %c6_299 = arith.constant 6 : index
    %607 = memref.load %arg5[%c6_299] : memref<8xf32, #tpu.memory_space<smem>>
    %608 = vector.broadcast %607 : f32 to vector<3x128xf32>
    %609 = arith.addf %606, %608 : vector<3x128xf32>
    %cst_300 = arith.constant 0.000000e+00 : f32
    %610 = vector.broadcast %cst_300 : f32 to vector<3x128xf32>
    %611 = arith.maximumf %609, %610 : vector<3x128xf32>
    %c7_301 = arith.constant 7 : index
    %c0_302 = arith.constant 0 : index
    %612 = memref.load %arg4[%c7_301, %c0_302] : memref<8x12xf32, #tpu.memory_space<smem>>
    %613 = vector.broadcast %612 : f32 to vector<3x128xf32>
    %614 = arith.mulf %27, %613 : vector<3x128xf32>
    %c7_303 = arith.constant 7 : index
    %c1_304 = arith.constant 1 : index
    %615 = memref.load %arg4[%c7_303, %c1_304] : memref<8x12xf32, #tpu.memory_space<smem>>
    %616 = vector.broadcast %615 : f32 to vector<3x128xf32>
    %617 = arith.mulf %47, %616 : vector<3x128xf32>
    %618 = arith.addf %614, %617 : vector<3x128xf32>
    %c7_305 = arith.constant 7 : index
    %c2_306 = arith.constant 2 : index
    %619 = memref.load %arg4[%c7_305, %c2_306] : memref<8x12xf32, #tpu.memory_space<smem>>
    %620 = vector.broadcast %619 : f32 to vector<3x128xf32>
    %621 = arith.mulf %67, %620 : vector<3x128xf32>
    %622 = arith.addf %618, %621 : vector<3x128xf32>
    %c7_307 = arith.constant 7 : index
    %c3_308 = arith.constant 3 : index
    %623 = memref.load %arg4[%c7_307, %c3_308] : memref<8x12xf32, #tpu.memory_space<smem>>
    %624 = vector.broadcast %623 : f32 to vector<3x128xf32>
    %625 = arith.mulf %87, %624 : vector<3x128xf32>
    %626 = arith.addf %622, %625 : vector<3x128xf32>
    %c7_309 = arith.constant 7 : index
    %c4_310 = arith.constant 4 : index
    %627 = memref.load %arg4[%c7_309, %c4_310] : memref<8x12xf32, #tpu.memory_space<smem>>
    %628 = vector.broadcast %627 : f32 to vector<3x128xf32>
    %629 = arith.mulf %107, %628 : vector<3x128xf32>
    %630 = arith.addf %626, %629 : vector<3x128xf32>
    %c7_311 = arith.constant 7 : index
    %c5_312 = arith.constant 5 : index
    %631 = memref.load %arg4[%c7_311, %c5_312] : memref<8x12xf32, #tpu.memory_space<smem>>
    %632 = vector.broadcast %631 : f32 to vector<3x128xf32>
    %633 = arith.mulf %127, %632 : vector<3x128xf32>
    %634 = arith.addf %630, %633 : vector<3x128xf32>
    %c7_313 = arith.constant 7 : index
    %c6_314 = arith.constant 6 : index
    %635 = memref.load %arg4[%c7_313, %c6_314] : memref<8x12xf32, #tpu.memory_space<smem>>
    %636 = vector.broadcast %635 : f32 to vector<3x128xf32>
    %637 = arith.mulf %147, %636 : vector<3x128xf32>
    %638 = arith.addf %634, %637 : vector<3x128xf32>
    %c7_315 = arith.constant 7 : index
    %c7_316 = arith.constant 7 : index
    %639 = memref.load %arg4[%c7_315, %c7_316] : memref<8x12xf32, #tpu.memory_space<smem>>
    %640 = vector.broadcast %639 : f32 to vector<3x128xf32>
    %641 = arith.mulf %167, %640 : vector<3x128xf32>
    %642 = arith.addf %638, %641 : vector<3x128xf32>
    %c7_317 = arith.constant 7 : index
    %c8_318 = arith.constant 8 : index
    %643 = memref.load %arg4[%c7_317, %c8_318] : memref<8x12xf32, #tpu.memory_space<smem>>
    %644 = vector.broadcast %643 : f32 to vector<3x128xf32>
    %645 = arith.mulf %187, %644 : vector<3x128xf32>
    %646 = arith.addf %642, %645 : vector<3x128xf32>
    %c7_319 = arith.constant 7 : index
    %c9_320 = arith.constant 9 : index
    %647 = memref.load %arg4[%c7_319, %c9_320] : memref<8x12xf32, #tpu.memory_space<smem>>
    %648 = vector.broadcast %647 : f32 to vector<3x128xf32>
    %649 = arith.mulf %207, %648 : vector<3x128xf32>
    %650 = arith.addf %646, %649 : vector<3x128xf32>
    %c7_321 = arith.constant 7 : index
    %c10_322 = arith.constant 10 : index
    %651 = memref.load %arg4[%c7_321, %c10_322] : memref<8x12xf32, #tpu.memory_space<smem>>
    %652 = vector.broadcast %651 : f32 to vector<3x128xf32>
    %653 = arith.mulf %227, %652 : vector<3x128xf32>
    %654 = arith.addf %650, %653 : vector<3x128xf32>
    %c7_323 = arith.constant 7 : index
    %c11_324 = arith.constant 11 : index
    %655 = memref.load %arg4[%c7_323, %c11_324] : memref<8x12xf32, #tpu.memory_space<smem>>
    %656 = vector.broadcast %655 : f32 to vector<3x128xf32>
    %657 = arith.mulf %247, %656 : vector<3x128xf32>
    %658 = arith.addf %654, %657 : vector<3x128xf32>
    %c7_325 = arith.constant 7 : index
    %659 = memref.load %arg5[%c7_325] : memref<8xf32, #tpu.memory_space<smem>>
    %660 = vector.broadcast %659 : f32 to vector<3x128xf32>
    %661 = arith.addf %658, %660 : vector<3x128xf32>
    %cst_326 = arith.constant 0.000000e+00 : f32
    %662 = vector.broadcast %cst_326 : f32 to vector<3x128xf32>
    %663 = arith.maximumf %661, %662 : vector<3x128xf32>
    %c0_327 = arith.constant 0 : index
    %c0_328 = arith.constant 0 : index
    %664 = memref.load %arg6[%c0_327, %c0_328] : memref<2x8xf32, #tpu.memory_space<smem>>
    %665 = vector.broadcast %664 : f32 to vector<3x128xf32>
    %666 = arith.mulf %299, %665 : vector<3x128xf32>
    %c0_329 = arith.constant 0 : index
    %c1_330 = arith.constant 1 : index
    %667 = memref.load %arg6[%c0_329, %c1_330] : memref<2x8xf32, #tpu.memory_space<smem>>
    %668 = vector.broadcast %667 : f32 to vector<3x128xf32>
    %669 = arith.mulf %351, %668 : vector<3x128xf32>
    %670 = arith.addf %666, %669 : vector<3x128xf32>
    %c0_331 = arith.constant 0 : index
    %c2_332 = arith.constant 2 : index
    %671 = memref.load %arg6[%c0_331, %c2_332] : memref<2x8xf32, #tpu.memory_space<smem>>
    %672 = vector.broadcast %671 : f32 to vector<3x128xf32>
    %673 = arith.mulf %403, %672 : vector<3x128xf32>
    %674 = arith.addf %670, %673 : vector<3x128xf32>
    %c0_333 = arith.constant 0 : index
    %c3_334 = arith.constant 3 : index
    %675 = memref.load %arg6[%c0_333, %c3_334] : memref<2x8xf32, #tpu.memory_space<smem>>
    %676 = vector.broadcast %675 : f32 to vector<3x128xf32>
    %677 = arith.mulf %455, %676 : vector<3x128xf32>
    %678 = arith.addf %674, %677 : vector<3x128xf32>
    %c0_335 = arith.constant 0 : index
    %c4_336 = arith.constant 4 : index
    %679 = memref.load %arg6[%c0_335, %c4_336] : memref<2x8xf32, #tpu.memory_space<smem>>
    %680 = vector.broadcast %679 : f32 to vector<3x128xf32>
    %681 = arith.mulf %507, %680 : vector<3x128xf32>
    %682 = arith.addf %678, %681 : vector<3x128xf32>
    %c0_337 = arith.constant 0 : index
    %c5_338 = arith.constant 5 : index
    %683 = memref.load %arg6[%c0_337, %c5_338] : memref<2x8xf32, #tpu.memory_space<smem>>
    %684 = vector.broadcast %683 : f32 to vector<3x128xf32>
    %685 = arith.mulf %559, %684 : vector<3x128xf32>
    %686 = arith.addf %682, %685 : vector<3x128xf32>
    %c0_339 = arith.constant 0 : index
    %c6_340 = arith.constant 6 : index
    %687 = memref.load %arg6[%c0_339, %c6_340] : memref<2x8xf32, #tpu.memory_space<smem>>
    %688 = vector.broadcast %687 : f32 to vector<3x128xf32>
    %689 = arith.mulf %611, %688 : vector<3x128xf32>
    %690 = arith.addf %686, %689 : vector<3x128xf32>
    %c0_341 = arith.constant 0 : index
    %c7_342 = arith.constant 7 : index
    %691 = memref.load %arg6[%c0_341, %c7_342] : memref<2x8xf32, #tpu.memory_space<smem>>
    %692 = vector.broadcast %691 : f32 to vector<3x128xf32>
    %693 = arith.mulf %663, %692 : vector<3x128xf32>
    %694 = arith.addf %690, %693 : vector<3x128xf32>
    %c0_343 = arith.constant 0 : index
    %695 = memref.load %arg7[%c0_343] : memref<2xf32, #tpu.memory_space<smem>>
    %696 = vector.broadcast %695 : f32 to vector<3x128xf32>
    %697 = arith.addf %694, %696 : vector<3x128xf32>
    %c1_344 = arith.constant 1 : index
    %c0_345 = arith.constant 0 : index
    %698 = memref.load %arg6[%c1_344, %c0_345] : memref<2x8xf32, #tpu.memory_space<smem>>
    %699 = vector.broadcast %698 : f32 to vector<3x128xf32>
    %700 = arith.mulf %299, %699 : vector<3x128xf32>
    %c1_346 = arith.constant 1 : index
    %c1_347 = arith.constant 1 : index
    %701 = memref.load %arg6[%c1_346, %c1_347] : memref<2x8xf32, #tpu.memory_space<smem>>
    %702 = vector.broadcast %701 : f32 to vector<3x128xf32>
    %703 = arith.mulf %351, %702 : vector<3x128xf32>
    %704 = arith.addf %700, %703 : vector<3x128xf32>
    %c1_348 = arith.constant 1 : index
    %c2_349 = arith.constant 2 : index
    %705 = memref.load %arg6[%c1_348, %c2_349] : memref<2x8xf32, #tpu.memory_space<smem>>
    %706 = vector.broadcast %705 : f32 to vector<3x128xf32>
    %707 = arith.mulf %403, %706 : vector<3x128xf32>
    %708 = arith.addf %704, %707 : vector<3x128xf32>
    %c1_350 = arith.constant 1 : index
    %c3_351 = arith.constant 3 : index
    %709 = memref.load %arg6[%c1_350, %c3_351] : memref<2x8xf32, #tpu.memory_space<smem>>
    %710 = vector.broadcast %709 : f32 to vector<3x128xf32>
    %711 = arith.mulf %455, %710 : vector<3x128xf32>
    %712 = arith.addf %708, %711 : vector<3x128xf32>
    %c1_352 = arith.constant 1 : index
    %c4_353 = arith.constant 4 : index
    %713 = memref.load %arg6[%c1_352, %c4_353] : memref<2x8xf32, #tpu.memory_space<smem>>
    %714 = vector.broadcast %713 : f32 to vector<3x128xf32>
    %715 = arith.mulf %507, %714 : vector<3x128xf32>
    %716 = arith.addf %712, %715 : vector<3x128xf32>
    %c1_354 = arith.constant 1 : index
    %c5_355 = arith.constant 5 : index
    %717 = memref.load %arg6[%c1_354, %c5_355] : memref<2x8xf32, #tpu.memory_space<smem>>
    %718 = vector.broadcast %717 : f32 to vector<3x128xf32>
    %719 = arith.mulf %559, %718 : vector<3x128xf32>
    %720 = arith.addf %716, %719 : vector<3x128xf32>
    %c1_356 = arith.constant 1 : index
    %c6_357 = arith.constant 6 : index
    %721 = memref.load %arg6[%c1_356, %c6_357] : memref<2x8xf32, #tpu.memory_space<smem>>
    %722 = vector.broadcast %721 : f32 to vector<3x128xf32>
    %723 = arith.mulf %611, %722 : vector<3x128xf32>
    %724 = arith.addf %720, %723 : vector<3x128xf32>
    %c1_358 = arith.constant 1 : index
    %c7_359 = arith.constant 7 : index
    %725 = memref.load %arg6[%c1_358, %c7_359] : memref<2x8xf32, #tpu.memory_space<smem>>
    %726 = vector.broadcast %725 : f32 to vector<3x128xf32>
    %727 = arith.mulf %663, %726 : vector<3x128xf32>
    %728 = arith.addf %724, %727 : vector<3x128xf32>
    %c1_360 = arith.constant 1 : index
    %729 = memref.load %arg7[%c1_360] : memref<2xf32, #tpu.memory_space<smem>>
    %730 = vector.broadcast %729 : f32 to vector<3x128xf32>
    %731 = arith.addf %728, %730 : vector<3x128xf32>
    %c0_361 = arith.constant 0 : index
    %c0_362 = arith.constant 0 : index
    %c0_363 = arith.constant 0 : index
    %732 = vector.load %arg8[%c0_361, %c0_362, %c0_363] : memref<2x3x128xf32, #tpu.memory_space<vmem>>, vector<1x3x128xf32>
    %733 = vector.shape_cast %732 : vector<1x3x128xf32> to vector<3x128xf32>
    %734 = vector.shape_cast %697 : vector<3x128xf32> to vector<1x3x128xf32>
    tpu.vector_store %arg8[%c0_361, %c0_362, %c0_363], %734 {strides = array<i32>} : memref<2x3x128xf32, #tpu.memory_space<vmem>>, vector<1x3x128xf32>,
    %c1_364 = arith.constant 1 : index
    %c0_365 = arith.constant 0 : index
    %c0_366 = arith.constant 0 : index
    %735 = vector.load %arg8[%c1_364, %c0_365, %c0_366] : memref<2x3x128xf32, #tpu.memory_space<vmem>>, vector<1x3x128xf32>
    %736 = vector.shape_cast %735 : vector<1x3x128xf32> to vector<3x128xf32>
    %737 = vector.shape_cast %731 : vector<3x128xf32> to vector<1x3x128xf32>
    tpu.vector_store %arg8[%c1_364, %c0_365, %c0_366], %737 {strides = array<i32>} : memref<2x3x128xf32, #tpu.memory_space<vmem>>, vector<1x3x128xf32>,
    return
  }
  func.func @transform_0(%arg0: i32) -> (i32, i32, i32) {
    %c0_i32 = arith.constant 0 : i32
    %c0_i32_0 = arith.constant 0 : i32
    %c0_i32_1 = arith.constant 0 : i32
    return %c0_i32, %arg0, %c0_i32_0 : i32, i32, i32
  }
  func.func @transform_1(%arg0: i32) -> (i32, i32) {
    %c0_i32 = arith.constant 0 : i32
    %c0_i32_0 = arith.constant 0 : i32
    %c0_i32_1 = arith.constant 0 : i32
    return %c0_i32, %c0_i32_0 : i32, i32
  }
  func.func @transform_2(%arg0: i32) -> i32 {
    %c0_i32 = arith.constant 0 : i32
    %c0_i32_0 = arith.constant 0 : i32
    return %c0_i32 : i32
  }
  func.func @transform_3(%arg0: i32) -> (i32, i32) {
    %c0_i32 = arith.constant 0 : i32
    %c0_i32_0 = arith.constant 0 : i32
    %c0_i32_1 = arith.constant 0 : i32
    return %c0_i32, %c0_i32_0 : i32, i32
  }
  func.func @transform_4(%arg0: i32) -> i32 {
    %c0_i32 = arith.constant 0 : i32
    %c0_i32_0 = arith.constant 0 : i32
    return %c0_i32 : i32
  }
  func.func @transform_5(%arg0: i32) -> (i32, i32) {
    %c0_i32 = arith.constant 0 : i32
    %c0_i32_0 = arith.constant 0 : i32
    %c0_i32_1 = arith.constant 0 : i32
    return %c0_i32, %c0_i32_0 : i32, i32
  }
  func.func @transform_6(%arg0: i32) -> i32 {
    %c0_i32 = arith.constant 0 : i32
    %c0_i32_0 = arith.constant 0 : i32
    return %c0_i32 : i32
  }
  func.func @transform_7(%arg0: i32) -> (i32, i32, i32) {
    %c0_i32 = arith.constant 0 : i32
    %c0_i32_0 = arith.constant 0 : i32
    %c0_i32_1 = arith.constant 0 : i32
    return %c0_i32, %arg0, %c0_i32_0 : i32, i32, i32
  }
}

</mosaic_0001>

<llo_original>
// kernel: dqn_forward.1
$region0: #{dqn_forward.1}
  #allocation0 [shape = 'u32[]', space=smem, size = 0x4, offset = 0x4, fixed_abs, tag = 'smem constant byte address 0x4 - core index']
  #allocation1 [shape = 'u32[72,128]{1,0:T(1,128)}', space=vmem, size = 0x9000, scoped, tag = 'internal scratch']
  %s0 = inlined_call_operand.vmem [shape: f32[4,3,128], index: 0, kind: input, shape index: {}]
  %s1 = inlined_call_operand.vmem [shape: f32[12,4], index: 1, kind: input, shape index: {}]
  %s2 = inlined_call_operand.vmem [shape: f32[12], index: 2, kind: input, shape index: {}]
  %s3 = inlined_call_operand.vmem [shape: f32[8,12], index: 3, kind: input, shape index: {}]
  %s4 = inlined_call_operand.vmem [shape: f32[8], index: 4, kind: input, shape index: {}]
  %s5 = inlined_call_operand.vmem [shape: f32[2,8], index: 5, kind: input, shape index: {}]
  %s6 = inlined_call_operand.vmem [shape: f32[2], index: 6, kind: input, shape index: {}]
  %s7 = inlined_call_operand.vmem [shape: f32[2,3,128], index: 7, kind: output, shape index: {}]
  %s8 = sld [smem:[#allocation0]]
  $region62: #{dqn_forward.1} parent=0
    _
  %s10 = ssub.s32 1, %s8
  %s11 = scalar_select 0, %s10, %s8
  $region1: #{dqn_forward.1} parent=0
    #allocation2 [shape = 'u8[8192]{0}', space=smem, size = 0x2000, scoped, tag = 'input window, operand 1, single buffered']
    #allocation3 [shape = 's32[1]{0}', space=sflag, size = 0x4, scoped, tag = 'scoped memory for dqn_forward.1']
    #allocation4 [shape = 'u8[512]{0}', space=smem, size = 0x200, scoped, tag = 'input window, operand 2, single buffered']
    #allocation5 [shape = 's32[1]{0}', space=sflag, size = 0x4, scoped, tag = 'scoped memory for dqn_forward.1']
    #allocation6 [shape = 'u8[4096]{0}', space=smem, size = 0x1000, scoped, tag = 'input window, operand 3, single buffered']
    #allocation7 [shape = 'u8[512]{0}', space=smem, size = 0x200, scoped, tag = 'input window, operand 4, single buffered']
    #allocation8 [shape = 's32[1]{0}', space=sflag, size = 0x4, scoped, tag = 'scoped memory for dqn_forward.1']
    #allocation9 [shape = 'u8[1024]{0}', space=smem, size = 0x400, scoped, tag = 'input window, operand 5, single buffered']
    #allocation10 [shape = 'u8[512]{0}', space=smem, size = 0x200, scoped, tag = 'input window, operand 6, single buffered']
    #allocation11 [shape = 's32[1]{0}', space=sflag, size = 0x4, scoped, tag = 'scoped memory for dqn_forward.1']
    %12 = vsyncpa [#allocation3], 0
    %13 = vsyncpa [#allocation5], 0
    %14 = vsyncpa [#allocation8], 0
    %15 = vsyncpa [#allocation11], 0
    // Predicated region
    $region2: #{dqn_forward.1} parent=1 // pred_check
      _
    $region3: #{dqn_forward.1} parent=1 // pred_check_branch
      %17 = sbr.rel (0) target = $region5
    $region4: #{dqn_forward.1} parent=1 // pred_region
      _
    $region5: #{dqn_forward.1} parent=1 // pred_fallthru
      _
    // Predicated region
    $region6: #{dqn_forward.1} parent=1 // pred_check
      _
    $region7: #{dqn_forward.1} parent=1 // pred_check_branch
      %19 = sbr.rel (0) target = $region9
    $region8: #{dqn_forward.1} parent=1 // pred_region
      %21 = vsyncadd [#allocation3], 0
      %s22 = sshll.u32 %s1, 4
      %s23 = int_to_ptr.vmem [resolvable:$true] %s22
      %28 = dma.vmem_to_smem %s23, 256, [#allocation2], [#allocation3], 128, 128, 8
    $region9: #{dqn_forward.1} parent=1 // pred_fallthru
      _
    // Predicated region
    $region10: #{dqn_forward.1} parent=1 // pred_check
      _
    $region11: #{dqn_forward.1} parent=1 // pred_check_branch
      %30 = sbr.rel (0) target = $region13
    $region12: #{dqn_forward.1} parent=1 // pred_region
      %32 = vsyncadd [#allocation5], 0
      %s34 = sshll.u32 %s2, 4
      %s35 = int_to_ptr.vmem [resolvable:$true] %s34
      %37 = dma.vmem_to_smem %s35, 16, [#allocation4], [#allocation5]
    $region13: #{dqn_forward.1} parent=1 // pred_fallthru
      _
    // Predicated region
    $region14: #{dqn_forward.1} parent=1 // pred_check
      _
    $region15: #{dqn_forward.1} parent=1 // pred_check_branch
      %39 = sbr.rel (0) target = $region17
    $region16: #{dqn_forward.1} parent=1 // pred_region
      %41 = vsyncadd [#allocation5], 0
      %s43 = sshll.u32 %s3, 4
      %s44 = int_to_ptr.vmem [resolvable:$true] %s43
      %46 = dma.vmem_to_smem %s44, 128, [#allocation6], [#allocation5]
    $region17: #{dqn_forward.1} parent=1 // pred_fallthru
      _
    // Predicated region
    $region18: #{dqn_forward.1} parent=1 // pred_check
      _
    $region19: #{dqn_forward.1} parent=1 // pred_check_branch
      %48 = sbr.rel (0) target = $region21
    $region20: #{dqn_forward.1} parent=1 // pred_region
      %50 = vsyncadd [#allocation8], 0
      %s52 = sshll.u32 %s4, 4
      %s53 = int_to_ptr.vmem [resolvable:$true] %s52
      %55 = dma.vmem_to_smem %s53, 16, [#allocation7], [#allocation8]
    $region21: #{dqn_forward.1} parent=1 // pred_fallthru
      _
    // Predicated region
    $region22: #{dqn_forward.1} parent=1 // pred_check
      _
    $region23: #{dqn_forward.1} parent=1 // pred_check_branch
      %57 = sbr.rel (0) target = $region25
    $region24: #{dqn_forward.1} parent=1 // pred_region
      %59 = vsyncadd [#allocation8], 0
      %s61 = sshll.u32 %s5, 4
      %s62 = int_to_ptr.vmem [resolvable:$true] %s61
      %64 = dma.vmem_to_smem %s62, 32, [#allocation9], [#allocation8]
    $region25: #{dqn_forward.1} parent=1 // pred_fallthru
      _
    // Predicated region
    $region26: #{dqn_forward.1} parent=1 // pred_check
      _
    $region27: #{dqn_forward.1} parent=1 // pred_check_branch
      %66 = sbr.rel (0) target = $region29
    $region28: #{dqn_forward.1} parent=1 // pred_region
      %68 = vsyncadd [#allocation11], 0
      %s70 = sshll.u32 %s6, 4
      %s71 = int_to_ptr.vmem [resolvable:$true] %s70
      %73 = dma.vmem_to_smem %s71, 16, [#allocation10], [#allocation11]
    $region29: #{dqn_forward.1} parent=1 // pred_fallthru
      _
    // Predicated region
    $region30: #{dqn_forward.1} parent=1 // pred_check
      _
    $region31: #{dqn_forward.1} parent=1 // pred_check_branch
      %75 = sbr.rel (0) target = $region33
    $region32: #{dqn_forward.1} parent=1 // pred_region
      %77 = dma.done [#allocation3], 256
    $region33: #{dqn_forward.1} parent=1 // pred_fallthru
      _
    // Predicated region
    $region34: #{dqn_forward.1} parent=1 // pred_check
      _
    $region35: #{dqn_forward.1} parent=1 // pred_check_branch
      %79 = sbr.rel (0) target = $region37
    $region36: #{dqn_forward.1} parent=1 // pred_region
      %81 = dma.done [#allocation5], 16
    $region37: #{dqn_forward.1} parent=1 // pred_fallthru
      _
    // Predicated region
    $region38: #{dqn_forward.1} parent=1 // pred_check
      _
    $region39: #{dqn_forward.1} parent=1 // pred_check_branch
      %83 = sbr.rel (0) target = $region41
    $region40: #{dqn_forward.1} parent=1 // pred_region
      %85 = dma.done [#allocation5], 128
    $region41: #{dqn_forward.1} parent=1 // pred_fallthru
      _
    // Predicated region
    $region42: #{dqn_forward.1} parent=1 // pred_check
      _
    $region43: #{dqn_forward.1} parent=1 // pred_check_branch
      %87 = sbr.rel (0) target = $region45
    $region44: #{dqn_forward.1} parent=1 // pred_region
      %89 = dma.done [#allocation8], 16
    $region45: #{dqn_forward.1} parent=1 // pred_fallthru
      _
    // Predicated region
    $region46: #{dqn_forward.1} parent=1 // pred_check
      _
    $region47: #{dqn_forward.1} parent=1 // pred_check_branch
      %91 = sbr.rel (0) target = $region49
    $region48: #{dqn_forward.1} parent=1 // pred_region
      %93 = dma.done [#allocation8], 32
    $region49: #{dqn_forward.1} parent=1 // pred_fallthru
      _
    // Predicated region
    $region50: #{dqn_forward.1} parent=1 // pred_check
      _
    $region51: #{dqn_forward.1} parent=1 // pred_check_branch
      %95 = sbr.rel (0) target = $region53
    $region52: #{dqn_forward.1} parent=1 // pred_region
      %97 = dma.done [#allocation11], 16
    $region53: #{dqn_forward.1} parent=1 // pred_fallthru
      _
    %98 = sfence
    %v99 = vld [vmem:[%s0] sm:$0x7]
    %s100 = scalar_lea.vmem %s0, 4
    %v101 = vld [vmem:[%s100] sm:$0x7]
    %s102 = scalar_lea.vmem %s0, 8
    %v103 = vld [vmem:[%s102] sm:$0x7]
    %s104 = scalar_lea.vmem %s0, 12
    %v105 = vld [vmem:[%s104] sm:$0x7]
    %s106 = sld [smem:[#allocation2]]
    %v107 = vstv %s106
    %v108 = vmul.f32 %v99, %v107
    %s109 = sld [smem:[#allocation2 + $0x1]]
    %v110 = vstv %s109
    %v111 = vmul.f32 %v101, %v110
    %v112 = vadd.f32 %v108, %v111
    %s113 = sld [smem:[#allocation2 + $0x2]]
    %v114 = vstv %s113
    %v115 = vmul.f32 %v103, %v114
    %v116 = vadd.f32 %v112, %v115
    %s117 = sld [smem:[#allocation2 + $0x3]]
    %v118 = vstv %s117
    %v119 = vmul.f32 %v105, %v118
    %v120 = vadd.f32 %v116, %v119
    %s121 = sld [smem:[#allocation4]]
    %v122 = vstv %s121
    %v123 = vadd.f32 %v120, %v122
    %v124 = vmax.f32 %v123, 0.0
    %s125 = sld [smem:[#allocation2 + $0x80]]
    %v126 = vstv %s125
    %v127 = vmul.f32 %v99, %v126
    %s128 = sld [smem:[#allocation2 + $0x81]]
    %v129 = vstv %s128
    %v130 = vmul.f32 %v101, %v129
    %v131 = vadd.f32 %v127, %v130
    %s132 = sld [smem:[#allocation2 + $0x82]]
    %v133 = vstv %s132
    %v134 = vmul.f32 %v103, %v133
    %v135 = vadd.f32 %v131, %v134
    %s136 = sld [smem:[#allocation2 + $0x83]]
    %v137 = vstv %s136
    %v138 = vmul.f32 %v105, %v137
    %v139 = vadd.f32 %v135, %v138
    %s140 = sld [smem:[#allocation4 + $0x1]]
    %v141 = vstv %s140
    %v142 = vadd.f32 %v139, %v141
    %v143 = vmax.f32 %v142, 0.0
    %s144 = sld [smem:[#allocation2 + $0x100]]
    %v145 = vstv %s144
    %v146 = vmul.f32 %v99, %v145
    %s147 = sld [smem:[#allocation2 + $0x101]]
    %v148 = vstv %s147
    %v149 = vmul.f32 %v101, %v148
    %v150 = vadd.f32 %v146, %v149
    %s151 = sld [smem:[#allocation2 + $0x102]]
    %v152 = vstv %s151
    %v153 = vmul.f32 %v103, %v152
    %v154 = vadd.f32 %v150, %v153
    %s155 = sld [smem:[#allocation2 + $0x103]]
    %v156 = vstv %s155
    %v157 = vmul.f32 %v105, %v156
    %v158 = vadd.f32 %v154, %v157
    %s159 = sld [smem:[#allocation4 + $0x2]]
    %v160 = vstv %s159
    %v161 = vadd.f32 %v158, %v160
    %v162 = vmax.f32 %v161, 0.0
    %s163 = sld [smem:[#allocation2 + $0x180]]
    %v164 = vstv %s163
    %v165 = vmul.f32 %v99, %v164
    %s166 = sld [smem:[#allocation2 + $0x181]]
    %v167 = vstv %s166
    %v168 = vmul.f32 %v101, %v167
    %v169 = vadd.f32 %v165, %v168
    %s170 = sld [smem:[#allocation2 + $0x182]]
    %v171 = vstv %s170
    %v172 = vmul.f32 %v103, %v171
    %v173 = vadd.f32 %v169, %v172
    %s174 = sld [smem:[#allocation2 + $0x183]]
    %v175 = vstv %s174
    %v176 = vmul.f32 %v105, %v175
    %v177 = vadd.f32 %v173, %v176
    %s178 = sld [smem:[#allocation4 + $0x3]]
    %v179 = vstv %s178
    %v180 = vadd.f32 %v177, %v179
    %v181 = vmax.f32 %v180, 0.0
    %s182 = sld [smem:[#allocation2 + $0x200]]
    %v183 = vstv %s182
    %v184 = vmul.f32 %v99, %v183
    %s185 = sld [smem:[#allocation2 + $0x201]]
    %v186 = vstv %s185
    %v187 = vmul.f32 %v101, %v186
    %v188 = vadd.f32 %v184, %v187
    %s189 = sld [smem:[#allocation2 + $0x202]]
    %v190 = vstv %s189
    %v191 = vmul.f32 %v103, %v190
    %v192 = vadd.f32 %v188, %v191
    %s193 = sld [smem:[#allocation2 + $0x203]]
    %v194 = vstv %s193
    %v195 = vmul.f32 %v105, %v194
    %v196 = vadd.f32 %v192, %v195
    %s197 = sld [smem:[#allocation4 + $0x4]]
    %v198 = vstv %s197
    %v199 = vadd.f32 %v196, %v198
    %v200 = vmax.f32 %v199, 0.0
    %s201 = sld [smem:[#allocation2 + $0x280]]
    %v202 = vstv %s201
    %v203 = vmul.f32 %v99, %v202
    %s204 = sld [smem:[#allocation2 + $0x281]]
    %v205 = vstv %s204
    %v206 = vmul.f32 %v101, %v205
    %v207 = vadd.f32 %v203, %v206
    %s208 = sld [smem:[#allocation2 + $0x282]]
    %v209 = vstv %s208
    %v210 = vmul.f32 %v103, %v209
    %v211 = vadd.f32 %v207, %v210
    %s212 = sld [smem:[#allocation2 + $0x283]]
    %v213 = vstv %s212
    %v214 = vmul.f32 %v105, %v213
    %v215 = vadd.f32 %v211, %v214
    %s216 = sld [smem:[#allocation4 + $0x5]]
    %v217 = vstv %s216
    %v218 = vadd.f32 %v215, %v217
    %v219 = vmax.f32 %v218, 0.0
    %s220 = sld [smem:[#allocation2 + $0x300]]
    %v221 = vstv %s220
    %v222 = vmul.f32 %v99, %v221
    %s223 = sld [smem:[#allocation2 + $0x301]]
    %v224 = vstv %s223
    %v225 = vmul.f32 %v101, %v224
    %v226 = vadd.f32 %v222, %v225
    %s227 = sld [smem:[#allocation2 + $0x302]]
    %v228 = vstv %s227
    %v229 = vmul.f32 %v103, %v228
    %v230 = vadd.f32 %v226, %v229
    %s231 = sld [smem:[#allocation2 + $0x303]]
    %v232 = vstv %s231
    %v233 = vmul.f32 %v105, %v232
    %v234 = vadd.f32 %v230, %v233
    %s235 = sld [smem:[#allocation4 + $0x6]]
    %v236 = vstv %s235
    %v237 = vadd.f32 %v234, %v236
    %v238 = vmax.f32 %v237, 0.0
    %s239 = sld [smem:[#allocation2 + $0x380]]
    %v240 = vstv %s239
    %v241 = vmul.f32 %v99, %v240
    %s242 = sld [smem:[#allocation2 + $0x381]]
    %v243 = vstv %s242
    %v244 = vmul.f32 %v101, %v243
    %v245 = vadd.f32 %v241, %v244
    %s246 = sld [smem:[#allocation2 + $0x382]]
    %v247 = vstv %s246
    %v248 = vmul.f32 %v103, %v247
    %v249 = vadd.f32 %v245, %v248
    %s250 = sld [smem:[#allocation2 + $0x383]]
    %v251 = vstv %s250
    %v252 = vmul.f32 %v105, %v251
    %v253 = vadd.f32 %v249, %v252
    %s254 = sld [smem:[#allocation4 + $0x7]]
    %v255 = vstv %s254
    %v256 = vadd.f32 %v253, %v255
    %v257 = vmax.f32 %v256, 0.0
    %s258 = sld [smem:[#allocation2 + $0x400]]
    %v259 = vstv %s258
    %v260 = vmul.f32 %v99, %v259
    %s261 = sld [smem:[#allocation2 + $0x401]]
    %v262 = vstv %s261
    %v263 = vmul.f32 %v101, %v262
    %v264 = vadd.f32 %v260, %v263
    %s265 = sld [smem:[#allocation2 + $0x402]]
    %v266 = vstv %s265
    %v267 = vmul.f32 %v103, %v266
    %v268 = vadd.f32 %v264, %v267
    %s269 = sld [smem:[#allocation2 + $0x403]]
    %v270 = vstv %s269
    %v271 = vmul.f32 %v105, %v270
    %v272 = vadd.f32 %v268, %v271
    %s273 = sld [smem:[#allocation4 + $0x8]]
    %v274 = vstv %s273
    %v275 = vadd.f32 %v272, %v274
    %v276 = vmax.f32 %v275, 0.0
    %s277 = sld [smem:[#allocation2 + $0x480]]
    %v278 = vstv %s277
    %v279 = vmul.f32 %v99, %v278
    %s280 = sld [smem:[#allocation2 + $0x481]]
    %v281 = vstv %s280
    %v282 = vmul.f32 %v101, %v281
    %v283 = vadd.f32 %v279, %v282
    %s284 = sld [smem:[#allocation2 + $0x482]]
    %v285 = vstv %s284
    %v286 = vmul.f32 %v103, %v285
    %v287 = vadd.f32 %v283, %v286
    %s288 = sld [smem:[#allocation2 + $0x483]]
    %v289 = vstv %s288
    %v290 = vmul.f32 %v105, %v289
    %v291 = vadd.f32 %v287, %v290
    %s292 = sld [smem:[#allocation4 + $0x9]]
    %v293 = vstv %s292
    %v294 = vadd.f32 %v291, %v293
    %v295 = vmax.f32 %v294, 0.0
    %s296 = sld [smem:[#allocation2 + $0x500]]
    %v297 = vstv %s296
    %v298 = vmul.f32 %v99, %v297
    %s299 = sld [smem:[#allocation2 + $0x501]]
    %v300 = vstv %s299
    %v301 = vmul.f32 %v101, %v300
    %v302 = vadd.f32 %v298, %v301
    %s303 = sld [smem:[#allocation2 + $0x502]]
    %v304 = vstv %s303
    %v305 = vmul.f32 %v103, %v304
    %v306 = vadd.f32 %v302, %v305
    %s307 = sld [smem:[#allocation2 + $0x503]]
    %v308 = vstv %s307
    %v309 = vmul.f32 %v105, %v308
    %v310 = vadd.f32 %v306, %v309
    %s311 = sld [smem:[#allocation4 + $0xa]]
    %v312 = vstv %s311
    %v313 = vadd.f32 %v310, %v312
    %v314 = vmax.f32 %v313, 0.0
    %s315 = sld [smem:[#allocation2 + $0x580]]
    %v316 = vstv %s315
    %v317 = vmul.f32 %v99, %v316
    %s318 = sld [smem:[#allocation2 + $0x581]]
    %v319 = vstv %s318
    %v320 = vmul.f32 %v101, %v319
    %v321 = vadd.f32 %v317, %v320
    %s322 = sld [smem:[#allocation2 + $0x582]]
    %v323 = vstv %s322
    %v324 = vmul.f32 %v103, %v323
    %v325 = vadd.f32 %v321, %v324
    %s326 = sld [smem:[#allocation2 + $0x583]]
    %v327 = vstv %s326
    %v328 = vmul.f32 %v105, %v327
    %v329 = vadd.f32 %v325, %v328
    %s330 = sld [smem:[#allocation4 + $0xb]]
    %v331 = vstv %s330
    %v332 = vadd.f32 %v329, %v331
    %v333 = vmax.f32 %v332, 0.0
    %s334 = sld [smem:[#allocation6]]
    %v335 = vstv %s334
    %v336 = vmul.f32 %v124, %v335
    %s337 = sld [smem:[#allocation6 + $0x1]]
    %v338 = vstv %s337
    %v339 = vmul.f32 %v143, %v338
    %v340 = vadd.f32 %v336, %v339
    %s341 = sld [smem:[#allocation6 + $0x2]]
    %v342 = vstv %s341
    %v343 = vmul.f32 %v162, %v342
    %v344 = vadd.f32 %v340, %v343
    %s345 = sld [smem:[#allocation6 + $0x3]]
    %v346 = vstv %s345
    %v347 = vmul.f32 %v181, %v346
    %v348 = vadd.f32 %v344, %v347
    %s349 = sld [smem:[#allocation6 + $0x4]]
    %v350 = vstv %s349
    %v351 = vmul.f32 %v200, %v350
    %v352 = vadd.f32 %v348, %v351
    %s353 = sld [smem:[#allocation6 + $0x5]]
    %v354 = vstv %s353
    %v355 = vmul.f32 %v219, %v354
    %v356 = vadd.f32 %v352, %v355
    %s357 = sld [smem:[#allocation6 + $0x6]]
    %v358 = vstv %s357
    %v359 = vmul.f32 %v238, %v358
    %v360 = vadd.f32 %v356, %v359
    %s361 = sld [smem:[#allocation6 + $0x7]]
    %v362 = vstv %s361
    %v363 = vmul.f32 %v257, %v362
    %v364 = vadd.f32 %v360, %v363
    %s365 = sld [smem:[#allocation6 + $0x8]]
    %v366 = vstv %s365
    %v367 = vmul.f32 %v276, %v366
    %v368 = vadd.f32 %v364, %v367
    %s369 = sld [smem:[#allocation6 + $0x9]]
    %v370 = vstv %s369
    %v371 = vmul.f32 %v295, %v370
    %v372 = vadd.f32 %v368, %v371
    %s373 = sld [smem:[#allocation6 + $0xa]]
    %v374 = vstv %s373
    %v375 = vmul.f32 %v314, %v374
    %v376 = vadd.f32 %v372, %v375
    %s377 = sld [smem:[#allocation6 + $0xb]]
    %v378 = vstv %s377
    %v379 = vmul.f32 %v333, %v378
    %v380 = vadd.f32 %v376, %v379
    %s381 = sld [smem:[#allocation7]]
    %v382 = vstv %s381
    %v383 = vadd.f32 %v380, %v382
    %v384 = vmax.f32 %v383, 0.0
    %s385 = sld [smem:[#allocation6 + $0x80]]
    %v386 = vstv %s385
    %v387 = vmul.f32 %v124, %v386
    %s388 = sld [smem:[#allocation6 + $0x81]]
    %v389 = vstv %s388
    %v390 = vmul.f32 %v143, %v389
    %v391 = vadd.f32 %v387, %v390
    %s392 = sld [smem:[#allocation6 + $0x82]]
    %v393 = vstv %s392
    %v394 = vmul.f32 %v162, %v393
    %v395 = vadd.f32 %v391, %v394
    %s396 = sld [smem:[#allocation6 + $0x83]]
    %v397 = vstv %s396
    %v398 = vmul.f32 %v181, %v397
    %v399 = vadd.f32 %v395, %v398
    %s400 = sld [smem:[#allocation6 + $0x84]]
    %v401 = vstv %s400
    %v402 = vmul.f32 %v200, %v401
    %v403 = vadd.f32 %v399, %v402
    %s404 = sld [smem:[#allocation6 + $0x85]]
    %v405 = vstv %s404
    %v406 = vmul.f32 %v219, %v405
    %v407 = vadd.f32 %v403, %v406
    %s408 = sld [smem:[#allocation6 + $0x86]]
    %v409 = vstv %s408
    %v410 = vmul.f32 %v238, %v409
    %v411 = vadd.f32 %v407, %v410
    %s412 = sld [smem:[#allocation6 + $0x87]]
    %v413 = vstv %s412
    %v414 = vmul.f32 %v257, %v413
    %v415 = vadd.f32 %v411, %v414
    %s416 = sld [smem:[#allocation6 + $0x88]]
    %v417 = vstv %s416
    %v418 = vmul.f32 %v276, %v417
    %v419 = vadd.f32 %v415, %v418
    %s420 = sld [smem:[#allocation6 + $0x89]]
    %v421 = vstv %s420
    %v422 = vmul.f32 %v295, %v421
    %v423 = vadd.f32 %v419, %v422
    %s424 = sld [smem:[#allocation6 + $0x8a]]
    %v425 = vstv %s424
    %v426 = vmul.f32 %v314, %v425
    %v427 = vadd.f32 %v423, %v426
    %s428 = sld [smem:[#allocation6 + $0x8b]]
    %v429 = vstv %s428
    %v430 = vmul.f32 %v333, %v429
    %v431 = vadd.f32 %v427, %v430
    %s432 = sld [smem:[#allocation7 + $0x1]]
    %v433 = vstv %s432
    %v434 = vadd.f32 %v431, %v433
    %v435 = vmax.f32 %v434, 0.0
    %s436 = sld [smem:[#allocation6 + $0x100]]
    %v437 = vstv %s436
    %v438 = vmul.f32 %v124, %v437
    %s439 = sld [smem:[#allocation6 + $0x101]]
    %v440 = vstv %s439
    %v441 = vmul.f32 %v143, %v440
    %v442 = vadd.f32 %v438, %v441
    %s443 = sld [smem:[#allocation6 + $0x102]]
    %v444 = vstv %s443
    %v445 = vmul.f32 %v162, %v444
    %v446 = vadd.f32 %v442, %v445
    %s447 = sld [smem:[#allocation6 + $0x103]]
    %v448 = vstv %s447
    %v449 = vmul.f32 %v181, %v448
    %v450 = vadd.f32 %v446, %v449
    %s451 = sld [smem:[#allocation6 + $0x104]]
    %v452 = vstv %s451
    %v453 = vmul.f32 %v200, %v452
    %v454 = vadd.f32 %v450, %v453
    %s455 = sld [smem:[#allocation6 + $0x105]]
    %v456 = vstv %s455
    %v457 = vmul.f32 %v219, %v456
    %v458 = vadd.f32 %v454, %v457
    %s459 = sld [smem:[#allocation6 + $0x106]]
    %v460 = vstv %s459
    %v461 = vmul.f32 %v238, %v460
    %v462 = vadd.f32 %v458, %v461
    %s463 = sld [smem:[#allocation6 + $0x107]]
    %v464 = vstv %s463
    %v465 = vmul.f32 %v257, %v464
    %v466 = vadd.f32 %v462, %v465
    %s467 = sld [smem:[#allocation6 + $0x108]]
    %v468 = vstv %s467
    %v469 = vmul.f32 %v276, %v468
    %v470 = vadd.f32 %v466, %v469
    %s471 = sld [smem:[#allocation6 + $0x109]]
    %v472 = vstv %s471
    %v473 = vmul.f32 %v295, %v472
    %v474 = vadd.f32 %v470, %v473
    %s475 = sld [smem:[#allocation6 + $0x10a]]
    %v476 = vstv %s475
    %v477 = vmul.f32 %v314, %v476
    %v478 = vadd.f32 %v474, %v477
    %s479 = sld [smem:[#allocation6 + $0x10b]]
    %v480 = vstv %s479
    %v481 = vmul.f32 %v333, %v480
    %v482 = vadd.f32 %v478, %v481
    %s483 = sld [smem:[#allocation7 + $0x2]]
    %v484 = vstv %s483
    %v485 = vadd.f32 %v482, %v484
    %v486 = vmax.f32 %v485, 0.0
    %s487 = sld [smem:[#allocation6 + $0x180]]
    %v488 = vstv %s487
    %v489 = vmul.f32 %v124, %v488
    %s490 = sld [smem:[#allocation6 + $0x181]]
    %v491 = vstv %s490
    %v492 = vmul.f32 %v143, %v491
    %v493 = vadd.f32 %v489, %v492
    %s494 = sld [smem:[#allocation6 + $0x182]]
    %v495 = vstv %s494
    %v496 = vmul.f32 %v162, %v495
    %v497 = vadd.f32 %v493, %v496
    %s498 = sld [smem:[#allocation6 + $0x183]]
    %v499 = vstv %s498
    %v500 = vmul.f32 %v181, %v499
    %v501 = vadd.f32 %v497, %v500
    %s502 = sld [smem:[#allocation6 + $0x184]]
    %v503 = vstv %s502
    %v504 = vmul.f32 %v200, %v503
    %v505 = vadd.f32 %v501, %v504
    %s506 = sld [smem:[#allocation6 + $0x185]]
    %v507 = vstv %s506
    %v508 = vmul.f32 %v219, %v507
    %v509 = vadd.f32 %v505, %v508
    %s510 = sld [smem:[#allocation6 + $0x186]]
    %v511 = vstv %s510
    %v512 = vmul.f32 %v238, %v511
    %v513 = vadd.f32 %v509, %v512
    %s514 = sld [smem:[#allocation6 + $0x187]]
    %v515 = vstv %s514
    %v516 = vmul.f32 %v257, %v515
    %v517 = vadd.f32 %v513, %v516
    %s518 = sld [smem:[#allocation6 + $0x188]]
    %v519 = vstv %s518
    %v520 = vmul.f32 %v276, %v519
    %v521 = vadd.f32 %v517, %v520
    %s522 = sld [smem:[#allocation6 + $0x189]]
    %v523 = vstv %s522
    %v524 = vmul.f32 %v295, %v523
    %v525 = vadd.f32 %v521, %v524
    %s526 = sld [smem:[#allocation6 + $0x18a]]
    %v527 = vstv %s526
    %v528 = vmul.f32 %v314, %v527
    %v529 = vadd.f32 %v525, %v528
    %s530 = sld [smem:[#allocation6 + $0x18b]]
    %v531 = vstv %s530
    %v532 = vmul.f32 %v333, %v531
    %v533 = vadd.f32 %v529, %v532
    %s534 = sld [smem:[#allocation7 + $0x3]]
    %v535 = vstv %s534
    %v536 = vadd.f32 %v533, %v535
    %v537 = vmax.f32 %v536, 0.0
    %s538 = sld [smem:[#allocation6 + $0x200]]
    %v539 = vstv %s538
    %v540 = vmul.f32 %v124, %v539
    %s541 = sld [smem:[#allocation6 + $0x201]]
    %v542 = vstv %s541
    %v543 = vmul.f32 %v143, %v542
    %v544 = vadd.f32 %v540, %v543
    %s545 = sld [smem:[#allocation6 + $0x202]]
    %v546 = vstv %s545
    %v547 = vmul.f32 %v162, %v546
    %v548 = vadd.f32 %v544, %v547
    %s549 = sld [smem:[#allocation6 + $0x203]]
    %v550 = vstv %s549
    %v551 = vmul.f32 %v181, %v550
    %v552 = vadd.f32 %v548, %v551
    %s553 = sld [smem:[#allocation6 + $0x204]]
    %v554 = vstv %s553
    %v555 = vmul.f32 %v200, %v554
    %v556 = vadd.f32 %v552, %v555
    %s557 = sld [smem:[#allocation6 + $0x205]]
    %v558 = vstv %s557
    %v559 = vmul.f32 %v219, %v558
    %v560 = vadd.f32 %v556, %v559
    %s561 = sld [smem:[#allocation6 + $0x206]]
    %v562 = vstv %s561
    %v563 = vmul.f32 %v238, %v562
    %v564 = vadd.f32 %v560, %v563
    %s565 = sld [smem:[#allocation6 + $0x207]]
    %v566 = vstv %s565
    %v567 = vmul.f32 %v257, %v566
    %v568 = vadd.f32 %v564, %v567
    %s569 = sld [smem:[#allocation6 + $0x208]]
    %v570 = vstv %s569
    %v571 = vmul.f32 %v276, %v570
    %v572 = vadd.f32 %v568, %v571
    %s573 = sld [smem:[#allocation6 + $0x209]]
    %v574 = vstv %s573
    %v575 = vmul.f32 %v295, %v574
    %v576 = vadd.f32 %v572, %v575
    %s577 = sld [smem:[#allocation6 + $0x20a]]
    %v578 = vstv %s577
    %v579 = vmul.f32 %v314, %v578
    %v580 = vadd.f32 %v576, %v579
    %s581 = sld [smem:[#allocation6 + $0x20b]]
    %v582 = vstv %s581
    %v583 = vmul.f32 %v333, %v582
    %v584 = vadd.f32 %v580, %v583
    %s585 = sld [smem:[#allocation7 + $0x4]]
    %v586 = vstv %s585
    %v587 = vadd.f32 %v584, %v586
    %v588 = vmax.f32 %v587, 0.0
    %s589 = sld [smem:[#allocation6 + $0x280]]
    %v590 = vstv %s589
    %v591 = vmul.f32 %v124, %v590
    %s592 = sld [smem:[#allocation6 + $0x281]]
    %v593 = vstv %s592
    %v594 = vmul.f32 %v143, %v593
    %v595 = vadd.f32 %v591, %v594
    %s596 = sld [smem:[#allocation6 + $0x282]]
    %v597 = vstv %s596
    %v598 = vmul.f32 %v162, %v597
    %v599 = vadd.f32 %v595, %v598
    %s600 = sld [smem:[#allocation6 + $0x283]]
    %v601 = vstv %s600
    %v602 = vmul.f32 %v181, %v601
    %v603 = vadd.f32 %v599, %v602
    %s604 = sld [smem:[#allocation6 + $0x284]]
    %v605 = vstv %s604
    %v606 = vmul.f32 %v200, %v605
    %v607 = vadd.f32 %v603, %v606
    %s608 = sld [smem:[#allocation6 + $0x285]]
    %v609 = vstv %s608
    %v610 = vmul.f32 %v219, %v609
    %v611 = vadd.f32 %v607, %v610
    %s612 = sld [smem:[#allocation6 + $0x286]]
    %v613 = vstv %s612
    %v614 = vmul.f32 %v238, %v613
    %v615 = vadd.f32 %v611, %v614
    %s616 = sld [smem:[#allocation6 + $0x287]]
    %v617 = vstv %s616
    %v618 = vmul.f32 %v257, %v617
    %v619 = vadd.f32 %v615, %v618
    %s620 = sld [smem:[#allocation6 + $0x288]]
    %v621 = vstv %s620
    %v622 = vmul.f32 %v276, %v621
    %v623 = vadd.f32 %v619, %v622
    %s624 = sld [smem:[#allocation6 + $0x289]]
    %v625 = vstv %s624
    %v626 = vmul.f32 %v295, %v625
    %v627 = vadd.f32 %v623, %v626
    %s628 = sld [smem:[#allocation6 + $0x28a]]
    %v629 = vstv %s628
    %v630 = vmul.f32 %v314, %v629
    %v631 = vadd.f32 %v627, %v630
    %s632 = sld [smem:[#allocation6 + $0x28b]]
    %v633 = vstv %s632
    %v634 = vmul.f32 %v333, %v633
    %v635 = vadd.f32 %v631, %v634
    %s636 = sld [smem:[#allocation7 + $0x5]]
    %v637 = vstv %s636
    %v638 = vadd.f32 %v635, %v637
    %v639 = vmax.f32 %v638, 0.0
    %s640 = sld [smem:[#allocation6 + $0x300]]
    %v641 = vstv %s640
    %v642 = vmul.f32 %v124, %v641
    %s643 = sld [smem:[#allocation6 + $0x301]]
    %v644 = vstv %s643
    %v645 = vmul.f32 %v143, %v644
    %v646 = vadd.f32 %v642, %v645
    %s647 = sld [smem:[#allocation6 + $0x302]]
    %v648 = vstv %s647
    %v649 = vmul.f32 %v162, %v648
    %v650 = vadd.f32 %v646, %v649
    %s651 = sld [smem:[#allocation6 + $0x303]]
    %v652 = vstv %s651
    %v653 = vmul.f32 %v181, %v652
    %v654 = vadd.f32 %v650, %v653
    %s655 = sld [smem:[#allocation6 + $0x304]]
    %v656 = vstv %s655
    %v657 = vmul.f32 %v200, %v656
    %v658 = vadd.f32 %v654, %v657
    %s659 = sld [smem:[#allocation6 + $0x305]]
    %v660 = vstv %s659
    %v661 = vmul.f32 %v219, %v660
    %v662 = vadd.f32 %v658, %v661
    %s663 = sld [smem:[#allocation6 + $0x306]]
    %v664 = vstv %s663
    %v665 = vmul.f32 %v238, %v664
    %v666 = vadd.f32 %v662, %v665
    %s667 = sld [smem:[#allocation6 + $0x307]]
    %v668 = vstv %s667
    %v669 = vmul.f32 %v257, %v668
    %v670 = vadd.f32 %v666, %v669
    %s671 = sld [smem:[#allocation6 + $0x308]]
    %v672 = vstv %s671
    %v673 = vmul.f32 %v276, %v672
    %v674 = vadd.f32 %v670, %v673
    %s675 = sld [smem:[#allocation6 + $0x309]]
    %v676 = vstv %s675
    %v677 = vmul.f32 %v295, %v676
    %v678 = vadd.f32 %v674, %v677
    %s679 = sld [smem:[#allocation6 + $0x30a]]
    %v680 = vstv %s679
    %v681 = vmul.f32 %v314, %v680
    %v682 = vadd.f32 %v678, %v681
    %s683 = sld [smem:[#allocation6 + $0x30b]]
    %v684 = vstv %s683
    %v685 = vmul.f32 %v333, %v684
    %v686 = vadd.f32 %v682, %v685
    %s687 = sld [smem:[#allocation7 + $0x6]]
    %v688 = vstv %s687
    %v689 = vadd.f32 %v686, %v688
    %v690 = vmax.f32 %v689, 0.0
    %s691 = sld [smem:[#allocation6 + $0x380]]
    %v692 = vstv %s691
    %v693 = vmul.f32 %v124, %v692
    %s694 = sld [smem:[#allocation6 + $0x381]]
    %v695 = vstv %s694
    %v696 = vmul.f32 %v143, %v695
    %v697 = vadd.f32 %v693, %v696
    %s698 = sld [smem:[#allocation6 + $0x382]]
    %v699 = vstv %s698
    %v700 = vmul.f32 %v162, %v699
    %v701 = vadd.f32 %v697, %v700
    %s702 = sld [smem:[#allocation6 + $0x383]]
    %v703 = vstv %s702
    %v704 = vmul.f32 %v181, %v703
    %v705 = vadd.f32 %v701, %v704
    %s706 = sld [smem:[#allocation6 + $0x384]]
    %v707 = vstv %s706
    %v708 = vmul.f32 %v200, %v707
    %v709 = vadd.f32 %v705, %v708
    %s710 = sld [smem:[#allocation6 + $0x385]]
    %v711 = vstv %s710
    %v712 = vmul.f32 %v219, %v711
    %v713 = vadd.f32 %v709, %v712
    %s714 = sld [smem:[#allocation6 + $0x386]]
    %v715 = vstv %s714
    %v716 = vmul.f32 %v238, %v715
    %v717 = vadd.f32 %v713, %v716
    %s718 = sld [smem:[#allocation6 + $0x387]]
    %v719 = vstv %s718
    %v720 = vmul.f32 %v257, %v719
    %v721 = vadd.f32 %v717, %v720
    %s722 = sld [smem:[#allocation6 + $0x388]]
    %v723 = vstv %s722
    %v724 = vmul.f32 %v276, %v723
    %v725 = vadd.f32 %v721, %v724
    %s726 = sld [smem:[#allocation6 + $0x389]]
    %v727 = vstv %s726
    %v728 = vmul.f32 %v295, %v727
    %v729 = vadd.f32 %v725, %v728
    %s730 = sld [smem:[#allocation6 + $0x38a]]
    %v731 = vstv %s730
    %v732 = vmul.f32 %v314, %v731
    %v733 = vadd.f32 %v729, %v732
    %s734 = sld [smem:[#allocation6 + $0x38b]]
    %v735 = vstv %s734
    %v736 = vmul.f32 %v333, %v735
    %v737 = vadd.f32 %v733, %v736
    %s738 = sld [smem:[#allocation7 + $0x7]]
    %v739 = vstv %s738
    %v740 = vadd.f32 %v737, %v739
    %v741 = vmax.f32 %v740, 0.0
    %s742 = sld [smem:[#allocation9]]
    %v743 = vstv %s742
    %v744 = vmul.f32 %v384, %v743
    %s745 = sld [smem:[#allocation9 + $0x1]]
    %v746 = vstv %s745
    %v747 = vmul.f32 %v435, %v746
    %v748 = vadd.f32 %v744, %v747
    %s749 = sld [smem:[#allocation9 + $0x2]]
    %v750 = vstv %s749
    %v751 = vmul.f32 %v486, %v750
    %v752 = vadd.f32 %v748, %v751
    %s753 = sld [smem:[#allocation9 + $0x3]]
    %v754 = vstv %s753
    %v755 = vmul.f32 %v537, %v754
    %v756 = vadd.f32 %v752, %v755
    %s757 = sld [smem:[#allocation9 + $0x4]]
    %v758 = vstv %s757
    %v759 = vmul.f32 %v588, %v758
    %v760 = vadd.f32 %v756, %v759
    %s761 = sld [smem:[#allocation9 + $0x5]]
    %v762 = vstv %s761
    %v763 = vmul.f32 %v639, %v762
    %v764 = vadd.f32 %v760, %v763
    %s765 = sld [smem:[#allocation9 + $0x6]]
    %v766 = vstv %s765
    %v767 = vmul.f32 %v690, %v766
    %v768 = vadd.f32 %v764, %v767
    %s769 = sld [smem:[#allocation9 + $0x7]]
    %v770 = vstv %s769
    %v771 = vmul.f32 %v741, %v770
    %v772 = vadd.f32 %v768, %v771
    %s773 = sld [smem:[#allocation10]]
    %v774 = vstv %s773
    %v775 = vadd.f32 %v772, %v774
    %s776 = sld [smem:[#allocation9 + $0x80]]
    %v777 = vstv %s776
    %v778 = vmul.f32 %v384, %v777
    %s779 = sld [smem:[#allocation9 + $0x81]]
    %v780 = vstv %s779
    %v781 = vmul.f32 %v435, %v780
    %v782 = vadd.f32 %v778, %v781
    %s783 = sld [smem:[#allocation9 + $0x82]]
    %v784 = vstv %s783
    %v785 = vmul.f32 %v486, %v784
    %v786 = vadd.f32 %v782, %v785
    %s787 = sld [smem:[#allocation9 + $0x83]]
    %v788 = vstv %s787
    %v789 = vmul.f32 %v537, %v788
    %v790 = vadd.f32 %v786, %v789
    %s791 = sld [smem:[#allocation9 + $0x84]]
    %v792 = vstv %s791
    %v793 = vmul.f32 %v588, %v792
    %v794 = vadd.f32 %v790, %v793
    %s795 = sld [smem:[#allocation9 + $0x85]]
    %v796 = vstv %s795
    %v797 = vmul.f32 %v639, %v796
    %v798 = vadd.f32 %v794, %v797
    %s799 = sld [smem:[#allocation9 + $0x86]]
    %v800 = vstv %s799
    %v801 = vmul.f32 %v690, %v800
    %v802 = vadd.f32 %v798, %v801
    %s803 = sld [smem:[#allocation9 + $0x87]]
    %v804 = vstv %s803
    %v805 = vmul.f32 %v741, %v804
    %v806 = vadd.f32 %v802, %v805
    %s807 = sld [smem:[#allocation10 + $0x1]]
    %v808 = vstv %s807
    %v809 = vadd.f32 %v806, %v808
    %810 = vst [vmem:[%s7] sm:$0x7] %v775
    %s811 = scalar_lea.vmem %s7, 4
    %812 = vst [vmem:[%s811] sm:$0x7] %v809
    // Predicated region
    $region54: #{dqn_forward.1} parent=1 // pred_check
      _
    $region55: #{dqn_forward.1} parent=1 // pred_check_branch
      %814 = sbr.rel (0) target = $region57
    $region56: #{dqn_forward.1} parent=1 // pred_region
      _
    $region57: #{dqn_forward.1} parent=1 // pred_fallthru
      _
    // Predicated region
    $region58: #{dqn_forward.1} parent=1 // pred_check
      _
    $region59: #{dqn_forward.1} parent=1 // pred_check_branch
      %816 = sbr.rel (0) target = $region61
    $region60: #{dqn_forward.1} parent=1 // pred_region
      _
    $region61: #{dqn_forward.1} parent=1 // pred_fallthru
      _
    %817 = vsyncpa [#allocation3], 1
    %818 = vsyncpa [#allocation5], 1
    %819 = vsyncpa [#allocation8], 1
    %820 = vsyncpa [#allocation11], 1

</llo_original>
